<compile_context>
chip_gen: v6e
topology: v6e:2x2x1
jax: 0.10.0
libtpu: 0.0.40
codegen_flags: <defaults>
</compile_context>

<pallas_src>
import jax
import jax.numpy as jnp
from jax import lax
from jax.experimental import pallas as pl
from jax.experimental.pallas import tpu as pltpu


def _round_up(x, m):
    return ((x + m - 1) // m) * m


def _exp_acq_kernel(qa_ref, q_ref, wa_ref, wq_ref, b_ref, exp0_ref,
                    out_ref, r_scr, u_scr):
    """One grid step == one batch tile.

    qa_ref, q_ref : (Bt, L, dp)  original (unshifted) sequences
    wa_ref, wq_ref: (dp, 3*dp)   fused [gate|k|reset] weights for a / q halves
    b_ref         : (1, 3*dp)    fused bias
    exp0_ref      : (1, 1, dp)   learned initial state
    out_ref       : (Bt, L, dp)  output block (lane-dense)
    r_scr, u_scr  : (Bt, L, dp)  per-timestep reset / update terms (VMEM, f32)
    """
    Bt, L, dp = qa_ref.shape

    wa = wa_ref[...]
    wq = wq_ref[...]
    bias = b_ref[...]

    # ---- Phase 1: fused projections for ALL timesteps (MXU-bound) ----------
    if L % 8 == 0:
        # Merge (Bt, L) into one big M dim: a single (Bt*L, dp) @ (dp, 3dp)
        # GEMM feeds the MXU far better than Bt tiny GEMMs.
        qa2 = qa_ref[...].reshape(Bt * L, dp)
        q2 = q_ref[...].reshape(Bt * L, dp)
        pre = (jnp.dot(qa2, wa, preferred_element_type=jnp.float32)
               + jnp.dot(q2, wq, preferred_element_type=jnp.float32)
               + bias)                                     # (Bt*L, 3*dp)
        gate = jax.nn.sigmoid(pre[:, :dp])
        k_q = jnp.tanh(pre[:, dp:2 * dp])
        reset = jax.nn.sigmoid(pre[:, 2 * dp:])
        r_scr[...] = reset.reshape(Bt, L, dp)
        u_scr[...] = ((1.0 - reset) * gate * k_q).reshape(Bt, L, dp)
    else:
        for b in range(Bt):                                # small static loop
            pre = (jnp.dot(qa_ref[b], wa, preferred_element_type=jnp.float32)
                   + jnp.dot(q_ref[b], wq, preferred_element_type=jnp.float32)
                   + bias)                                 # (L, 3*dp)
            gate = jax.nn.sigmoid(pre[:, :dp])
            k_q = jnp.tanh(pre[:, dp:2 * dp])
            reset = jax.nn.sigmoid(pre[:, 2 * dp:])
            r_scr[b] = reset
            u_scr[b] = (1.0 - reset) * gate * k_q

    # ---- Phase 2: elementwise scan over time (VPU only, state in regs) -----
    state0 = jnp.broadcast_to(exp0_ref[...], (Bt, 1, dp))
    out_ref[:, 0:1, :] = state0                            # t == 0: init state

    def step(t, state):
        # Recurrence step t consumes projections of ORIGINAL row t-1: this is
        # exactly the right-shift (zero-row prepend) of the PyTorch module.
        r_t = r_scr[:, pl.ds(t - 1, 1), :]
        u_t = u_scr[:, pl.ds(t - 1, 1), :]
        state = r_t * state + u_t
        out_ref[:, pl.ds(t, 1), :] = state
        return state

    unroll = True if L <= 33 else 8
    lax.fori_loop(1, L, step, state0, unroll=unroll)


def exp_acq_pallas(q_embed_data, qa_embed_data, params, *, batch_tile=8):
    """params: exp (1,d), Wg/Wk/Wr (d,2d) [PyTorch Linear layout], bg/bk/br (d,)."""
    f32 = jnp.float32
    B, L, d = qa_embed_data.shape
    dp = _round_up(d, 128)                     # lane-dense feature dim
    Bt = batch_tile if (B >= batch_tile and B % batch_tile == 0) else B

    def pad2(m, rows, cols):
        m = m.astype(f32)
        return jnp.pad(m, ((0, rows - m.shape[0]), (0, cols - m.shape[1])))

    def split_w(W):
        # PyTorch Linear weight is (out=d, in=2d); x = [a, q]:
        #   x @ W.T == a @ W[:, :d].T + q @ W[:, d:].T
        return W[:, :d].T, W[:, d:].T

    wg_a, wg_q = split_w(params["Wg"])
    wk_a, wk_q = split_w(params["Wk"])
    wr_a, wr_q = split_w(params["Wr"])
    # Fused [gate | k | reset] weights; each (d,d) block zero-padded to (dp,dp)
    # so padded input lanes contribute exactly 0 and outputs stay dp-aligned.
    wa = jnp.concatenate(
        [pad2(wg_a, dp, dp), pad2(wk_a, dp, dp), pad2(wr_a, dp, dp)], axis=1)
    wq = jnp.concatenate(
        [pad2(wg_q, dp, dp), pad2(wk_q, dp, dp), pad2(wr_q, dp, dp)], axis=1)
    bias = jnp.concatenate(
        [pad2(params["bg"].reshape(1, d), 1, dp),
         pad2(params["bk"].reshape(1, d), 1, dp),
         pad2(params["br"].reshape(1, d), 1, dp)], axis=1)          # (1, 3dp)
    exp0 = pad2(params["exp"].reshape(1, d), 1, dp).reshape(1, 1, dp)

    q_in = q_embed_data.astype(f32)
    qa_in = qa_embed_data.astype(f32)
    if dp != d:
        q_in = jnp.pad(q_in, ((0, 0), (0, 0), (0, dp - d)))
        qa_in = jnp.pad(qa_in, ((0, 0), (0, 0), (0, dp - d)))

    seq_spec = pl.BlockSpec((Bt, L, dp), lambda i: (i, 0, 0))
    w_spec = pl.BlockSpec((dp, 3 * dp), lambda i: (0, 0))
    b_spec = pl.BlockSpec((1, 3 * dp), lambda i: (0, 0))
    e_spec = pl.BlockSpec((1, 1, dp), lambda i: (0, 0, 0))
    out_spec = pl.BlockSpec((Bt, L, dp), lambda i: (i, 0, 0))

    out = pl.pallas_call(
        _exp_acq_kernel,
        out_shape=jax.ShapeDtypeStruct((B, L, dp), f32),
        grid_spec=pltpu.PrefetchScalarGridSpec(
            num_scalar_prefetch=0,
            grid=(B // Bt,),
            in_specs=[seq_spec, seq_spec, w_spec, w_spec, b_spec, e_spec],
            out_specs=out_spec,
            scratch_shapes=[pltpu.VMEM((Bt, L, dp), jnp.float32),
                            pltpu.VMEM((Bt, L, dp), jnp.float32)],
        ),
        compiler_params=pltpu.CompilerParams(
            dimension_semantics=("parallel",),   # batch tiles independent
        ),
    )(qa_in, q_in, wa, wq, bias, exp0)

    return out[:, :, :d] if dp != d else out


def exp_acq_reference(q_embed_data, qa_embed_data, params):
    """Plain-JAX reference mirroring the PyTorch loop (seqlen = L-1)."""
    B, L, d = qa_embed_data.shape
    pad = jnp.zeros((B, 1, d), jnp.float32)
    a_emb = jnp.concatenate([pad, qa_embed_data[:, :-1, :]], axis=1)
    q_emb = jnp.concatenate([pad, q_embed_data[:, :-1, :]], axis=1)
    exp = jnp.broadcast_to(params["exp"], (B, d))
    hs = [exp[:, None, :]]
    for i in range(1, L):
        x = jnp.concatenate([a_emb[:, i], q_emb[:, i]], axis=-1)
        gate = jax.nn.sigmoid(x @ params["Wg"].T + params["bg"])
        k_q = jnp.tanh(x @ params["Wk"].T + params["bk"])
        reset = jax.nn.sigmoid(x @ params["Wr"].T + params["br"])
        exp = reset * exp + (1.0 - reset) * gate * k_q
        hs.append(exp[:, None, :])
    return jnp.concatenate(hs, axis=1)


def make_params(key, d):
    """Deterministic synthetic parameters (xavier-uniform-ish init)."""
    ks = jax.random.split(key, 7)

    def xavier(k, shape):
        fan_in, fan_out = shape[1], shape[0]
        bound = (6.0 / (fan_in + fan_out)) ** 0.5
        return jax.random.uniform(k, shape, jnp.float32, -bound, bound)

    return {
        "exp": xavier(ks[0], (1, d)),
        "Wg": xavier(ks[1], (d, 2 * d)),
        "bg": jax.random.uniform(ks[2], (d,), jnp.float32, -0.1, 0.1),
        "Wk": xavier(ks[3], (d, 2 * d)),
        "bk": jax.random.uniform(ks[4], (d,), jnp.float32, -0.1, 0.1),
        "Wr": xavier(ks[5], (d, 2 * d)),
        "br": jax.random.uniform(ks[6], (d,), jnp.float32, -0.1, 0.1),
    }


if __name__ == "__main__":
    # Small shapes; the module's hardcoded seqlen=99 generalizes to L-1 here.
    B, L, d = 8, 16, 32
    key = jax.random.PRNGKey(0)
    k_q, k_qa, k_p = jax.random.split(key, 3)
    q_embed = jax.random.normal(k_q, (B, L, d), jnp.float32)
    qa_embed = jax.random.normal(k_qa, (B, L, d), jnp.float32)
    params = make_params(k_p, d)

    out = exp_acq_pallas(q_embed, qa_embed, params)
    out = jax.block_until_ready(out)

    ref = exp_acq_reference(q_embed, qa_embed, params)
    assert out.shape == (B, L, d)
    assert jnp.allclose(out, ref, atol=1e-5, rtol=1e-5), "mismatch vs reference"

    print("KERNEL_OK")
</pallas_src>

<mosaic_0001>
module attributes {stable_mosaic.version = 11 : i64} {
  func.func @_exp_acq_kernel(%arg0: i32, %arg1: memref<8x16x128xf32, #tpu.memory_space<vmem>>, %arg2: memref<8x16x128xf32, #tpu.memory_space<vmem>>, %arg3: memref<128x384xf32, #tpu.memory_space<vmem>>, %arg4: memref<128x384xf32, #tpu.memory_space<vmem>>, %arg5: memref<1x384xf32, #tpu.memory_space<vmem>>, %arg6: memref<1x1x128xf32, #tpu.memory_space<vmem>>, %arg7: memref<8x16x128xf32, #tpu.memory_space<vmem>>, %arg8: memref<8x16x128xf32, #tpu.memory_space<vmem>>, %arg9: memref<8x16x128xf32, #tpu.memory_space<vmem>>) attributes {dimension_semantics = [#tpu.dimension_semantics<parallel>], iteration_bounds = array<i64: 1>, scalar_prefetch = 0 : i64, scratch_operands = 2 : i64, tpu.core_type = #tpu.core_type<tc>, window_params = [{transform_indices = @transform_0, window_bounds = array<i64: 8, 16, 128>}, {transform_indices = @transform_1, window_bounds = array<i64: 8, 16, 128>}, {pipeline_mode = #tpu.pipeline_mode<synchronous>, transform_indices = @transform_2, window_bounds = array<i64: 128, 384>}, {pipeline_mode = #tpu.pipeline_mode<synchronous>, transform_indices = @transform_3, window_bounds = array<i64: 128, 384>}, {pipeline_mode = #tpu.pipeline_mode<synchronous>, transform_indices = @transform_4, window_bounds = array<i64: 1, 384>}, {pipeline_mode = #tpu.pipeline_mode<synchronous>, transform_indices = @transform_5, window_bounds = array<i64: 1, 1, 128>}, {transform_indices = @transform_6, window_bounds = array<i64: 8, 16, 128>}]} {
    %c0 = arith.constant 0 : index
    %c0_0 = arith.constant 0 : index
    %0 = vector.load %arg3[%c0, %c0_0] : memref<128x384xf32, #tpu.memory_space<vmem>>, vector<128x384xf32>
    %c0_1 = arith.constant 0 : index
    %c0_2 = arith.constant 0 : index
    %1 = vector.load %arg4[%c0_1, %c0_2] : memref<128x384xf32, #tpu.memory_space<vmem>>, vector<128x384xf32>
    %c0_3 = arith.constant 0 : index
    %c0_4 = arith.constant 0 : index
    %2 = vector.load %arg5[%c0_3, %c0_4] : memref<1x384xf32, #tpu.memory_space<vmem>>, vector<1x384xf32>
    %c0_5 = arith.constant 0 : index
    %c0_6 = arith.constant 0 : index
    %c0_7 = arith.constant 0 : index
    %3 = vector.load %arg1[%c0_5, %c0_6, %c0_7] : memref<8x16x128xf32, #tpu.memory_space<vmem>>, vector<8x16x128xf32>
    %4 = vector.shape_cast %3 : vector<8x16x128xf32> to vector<128x128xf32>
    %c0_8 = arith.constant 0 : index
    %c0_9 = arith.constant 0 : index
    %c0_10 = arith.constant 0 : index
    %5 = vector.load %arg2[%c0_8, %c0_9, %c0_10] : memref<8x16x128xf32, #tpu.memory_space<vmem>>, vector<8x16x128xf32>
    %6 = vector.shape_cast %5 : vector<8x16x128xf32> to vector<128x128xf32>
    %cst = arith.constant dense<0.000000e+00> : vector<128x384xf32>
    %7 = tpu.matmul %4, %0, %cst {dimension_numbers = #tpu.dot_dimension_numbers<[1], [0], [0], [1], [0, 0, 1, 1], [], []>} : vector<128x128xf32>, vector<128x384xf32>, vector<128x384xf32> -> vector<128x384xf32>
    %cst_11 = arith.constant dense<0.000000e+00> : vector<128x384xf32>
    %8 = tpu.matmul %6, %1, %cst_11 {dimension_numbers = #tpu.dot_dimension_numbers<[1], [0], [0], [1], [0, 0, 1, 1], [], []>} : vector<128x128xf32>, vector<128x384xf32>, vector<128x384xf32> -> vector<128x384xf32>
    %9 = arith.addf %7, %8 : vector<128x384xf32>
    %10 = vector.broadcast %2 : vector<1x384xf32> to vector<128x384xf32>
    %11 = arith.addf %9, %10 : vector<128x384xf32>
    %12 = vector.extract_strided_slice %11 {offsets = [0, 0], sizes = [128, 128], strides = [1, 1]} : vector<128x384xf32> to vector<128x128xf32>
    %13 = arith.negf %12 : vector<128x128xf32>
    %14 = math.exp %13 : vector<128x128xf32>
    %cst_12 = arith.constant 1.000000e+00 : f32
    %15 = vector.broadcast %cst_12 : f32 to vector<128x128xf32>
    %16 = arith.addf %15, %14 : vector<128x128xf32>
    %17 = arith.divf %15, %16 : vector<128x128xf32>
    %18 = vector.extract_strided_slice %11 {offsets = [0, 128], sizes = [128, 128], strides = [1, 1]} : vector<128x384xf32> to vector<128x128xf32>
    %19 = math.tanh %18 : vector<128x128xf32>
    %20 = vector.extract_strided_slice %11 {offsets = [0, 256], sizes = [128, 128], strides = [1, 1]} : vector<128x384xf32> to vector<128x128xf32>
    %21 = arith.negf %20 : vector<128x128xf32>
    %22 = math.exp %21 : vector<128x128xf32>
    %cst_13 = arith.constant 1.000000e+00 : f32
    %23 = vector.broadcast %cst_13 : f32 to vector<128x128xf32>
    %24 = arith.addf %23, %22 : vector<128x128xf32>
    %25 = arith.divf %23, %24 : vector<128x128xf32>
    %26 = vector.shape_cast %25 : vector<128x128xf32> to vector<8x16x128xf32>
    %c0_14 = arith.constant 0 : index
    %c0_15 = arith.constant 0 : index
    %c0_16 = arith.constant 0 : index
    %27 = vector.load %arg8[%c0_14, %c0_15, %c0_16] : memref<8x16x128xf32, #tpu.memory_space<vmem>>, vector<8x16x128xf32>
    tpu.vector_store %arg8[%c0_14, %c0_15, %c0_16], %26 {strides = array<i32>} : memref<8x16x128xf32, #tpu.memory_space<vmem>>, vector<8x16x128xf32>,
    %cst_17 = arith.constant 1.000000e+00 : f32
    %28 = vector.broadcast %cst_17 : f32 to vector<128x128xf32>
    %29 = arith.subf %28, %25 : vector<128x128xf32>
    %30 = arith.mulf %29, %17 : vector<128x128xf32>
    %31 = arith.mulf %30, %19 : vector<128x128xf32>
    %32 = vector.shape_cast %31 : vector<128x128xf32> to vector<8x16x128xf32>
    %c0_18 = arith.constant 0 : index
    %c0_19 = arith.constant 0 : index
    %c0_20 = arith.constant 0 : index
    %33 = vector.load %arg9[%c0_18, %c0_19, %c0_20] : memref<8x16x128xf32, #tpu.memory_space<vmem>>, vector<8x16x128xf32>
    tpu.vector_store %arg9[%c0_18, %c0_19, %c0_20], %32 {strides = array<i32>} : memref<8x16x128xf32, #tpu.memory_space<vmem>>, vector<8x16x128xf32>,
    %c0_21 = arith.constant 0 : index
    %c0_22 = arith.constant 0 : index
    %c0_23 = arith.constant 0 : index
    %34 = vector.load %arg6[%c0_21, %c0_22, %c0_23] : memref<1x1x128xf32, #tpu.memory_space<vmem>>, vector<1x1x128xf32>
    %35 = vector.shape_cast %34 : vector<1x1x128xf32> to vector<1x1x128xf32>
    %36 = vector.broadcast %35 : vector<1x1x128xf32> to vector<8x1x128xf32>
    %c0_24 = arith.constant 0 : index
    %c0_25 = arith.constant 0 : index
    %c0_26 = arith.constant 0 : index
    %37 = vector.load %arg7[%c0_24, %c0_25, %c0_26] : memref<8x16x128xf32, #tpu.memory_space<vmem>>, vector<8x1x128xf32>
    tpu.vector_store %arg7[%c0_24, %c0_25, %c0_26], %36 {strides = array<i32>} : memref<8x16x128xf32, #tpu.memory_space<vmem>>, vector<8x1x128xf32>,
    %c1_i32 = arith.constant 1 : i32
    %c1_i32_27 = arith.constant 1 : i32
    %38 = arith.subi %c1_i32, %c1_i32_27 : i32
    %c0_28 = arith.constant 0 : index
    %39 = arith.index_cast %38 : i32 to index
    %c0_29 = arith.constant 0 : index
    %40 = vector.load %arg8[%c0_28, %39, %c0_29] : memref<8x16x128xf32, #tpu.memory_space<vmem>>, vector<8x1x128xf32>
    %c1_i32_30 = arith.constant 1 : i32
    %41 = arith.subi %c1_i32, %c1_i32_30 : i32
    %c0_31 = arith.constant 0 : index
    %42 = arith.index_cast %41 : i32 to index
    %c0_32 = arith.constant 0 : index
    %43 = vector.load %arg9[%c0_31, %42, %c0_32] : memref<8x16x128xf32, #tpu.memory_space<vmem>>, vector<8x1x128xf32>
    %44 = arith.mulf %40, %36 : vector<8x1x128xf32>
    %45 = arith.addf %44, %43 : vector<8x1x128xf32>
    %c0_33 = arith.constant 0 : index
    %46 = arith.index_cast %c1_i32 : i32 to index
    %c0_34 = arith.constant 0 : index
    %47 = vector.load %arg7[%c0_33, %46, %c0_34] : memref<8x16x128xf32, #tpu.memory_space<vmem>>, vector<8x1x128xf32>
    tpu.vector_store %arg7[%c0_33, %46, %c0_34], %45 {strides = array<i32>} : memref<8x16x128xf32, #tpu.memory_space<vmem>>, vector<8x1x128xf32>,
    %c2_i32 = arith.constant 2 : i32
    %c1_i32_35 = arith.constant 1 : i32
    %48 = arith.subi %c2_i32, %c1_i32_35 : i32
    %c0_36 = arith.constant 0 : index
    %49 = arith.index_cast %48 : i32 to index
    %c0_37 = arith.constant 0 : index
    %50 = vector.load %arg8[%c0_36, %49, %c0_37] : memref<8x16x128xf32, #tpu.memory_space<vmem>>, vector<8x1x128xf32>
    %c1_i32_38 = arith.constant 1 : i32
    %51 = arith.subi %c2_i32, %c1_i32_38 : i32
    %c0_39 = arith.constant 0 : index
    %52 = arith.index_cast %51 : i32 to index
    %c0_40 = arith.constant 0 : index
    %53 = vector.load %arg9[%c0_39, %52, %c0_40] : memref<8x16x128xf32, #tpu.memory_space<vmem>>, vector<8x1x128xf32>
    %54 = arith.mulf %50, %45 : vector<8x1x128xf32>
    %55 = arith.addf %54, %53 : vector<8x1x128xf32>
    %c0_41 = arith.constant 0 : index
    %56 = arith.index_cast %c2_i32 : i32 to index
    %c0_42 = arith.constant 0 : index
    %57 = vector.load %arg7[%c0_41, %56, %c0_42] : memref<8x16x128xf32, #tpu.memory_space<vmem>>, vector<8x1x128xf32>
    tpu.vector_store %arg7[%c0_41, %56, %c0_42], %55 {strides = array<i32>} : memref<8x16x128xf32, #tpu.memory_space<vmem>>, vector<8x1x128xf32>,
    %c3_i32 = arith.constant 3 : i32
    %c1_i32_43 = arith.constant 1 : i32
    %58 = arith.subi %c3_i32, %c1_i32_43 : i32
    %c0_44 = arith.constant 0 : index
    %59 = arith.index_cast %58 : i32 to index
    %c0_45 = arith.constant 0 : index
    %60 = vector.load %arg8[%c0_44, %59, %c0_45] : memref<8x16x128xf32, #tpu.memory_space<vmem>>, vector<8x1x128xf32>
    %c1_i32_46 = arith.constant 1 : i32
    %61 = arith.subi %c3_i32, %c1_i32_46 : i32
    %c0_47 = arith.constant 0 : index
    %62 = arith.index_cast %61 : i32 to index
    %c0_48 = arith.constant 0 : index
    %63 = vector.load %arg9[%c0_47, %62, %c0_48] : memref<8x16x128xf32, #tpu.memory_space<vmem>>, vector<8x1x128xf32>
    %64 = arith.mulf %60, %55 : vector<8x1x128xf32>
    %65 = arith.addf %64, %63 : vector<8x1x128xf32>
    %c0_49 = arith.constant 0 : index
    %66 = arith.index_cast %c3_i32 : i32 to index
    %c0_50 = arith.constant 0 : index
    %67 = vector.load %arg7[%c0_49, %66, %c0_50] : memref<8x16x128xf32, #tpu.memory_space<vmem>>, vector<8x1x128xf32>
    tpu.vector_store %arg7[%c0_49, %66, %c0_50], %65 {strides = array<i32>} : memref<8x16x128xf32, #tpu.memory_space<vmem>>, vector<8x1x128xf32>,
    %c4_i32 = arith.constant 4 : i32
    %c1_i32_51 = arith.constant 1 : i32
    %68 = arith.subi %c4_i32, %c1_i32_51 : i32
    %c0_52 = arith.constant 0 : index
    %69 = arith.index_cast %68 : i32 to index
    %c0_53 = arith.constant 0 : index
    %70 = vector.load %arg8[%c0_52, %69, %c0_53] : memref<8x16x128xf32, #tpu.memory_space<vmem>>, vector<8x1x128xf32>
    %c1_i32_54 = arith.constant 1 : i32
    %71 = arith.subi %c4_i32, %c1_i32_54 : i32
    %c0_55 = arith.constant 0 : index
    %72 = arith.index_cast %71 : i32 to index
    %c0_56 = arith.constant 0 : index
    %73 = vector.load %arg9[%c0_55, %72, %c0_56] : memref<8x16x128xf32, #tpu.memory_space<vmem>>, vector<8x1x128xf32>
    %74 = arith.mulf %70, %65 : vector<8x1x128xf32>
    %75 = arith.addf %74, %73 : vector<8x1x128xf32>
    %c0_57 = arith.constant 0 : index
    %76 = arith.index_cast %c4_i32 : i32 to index
    %c0_58 = arith.constant 0 : index
    %77 = vector.load %arg7[%c0_57, %76, %c0_58] : memref<8x16x128xf32, #tpu.memory_space<vmem>>, vector<8x1x128xf32>
    tpu.vector_store %arg7[%c0_57, %76, %c0_58], %75 {strides = array<i32>} : memref<8x16x128xf32, #tpu.memory_space<vmem>>, vector<8x1x128xf32>,
    %c5_i32 = arith.constant 5 : i32
    %c1_i32_59 = arith.constant 1 : i32
    %78 = arith.subi %c5_i32, %c1_i32_59 : i32
    %c0_60 = arith.constant 0 : index
    %79 = arith.index_cast %78 : i32 to index
    %c0_61 = arith.constant 0 : index
    %80 = vector.load %arg8[%c0_60, %79, %c0_61] : memref<8x16x128xf32, #tpu.memory_space<vmem>>, vector<8x1x128xf32>
    %c1_i32_62 = arith.constant 1 : i32
    %81 = arith.subi %c5_i32, %c1_i32_62 : i32
    %c0_63 = arith.constant 0 : index
    %82 = arith.index_cast %81 : i32 to index
    %c0_64 = arith.constant 0 : index
    %83 = vector.load %arg9[%c0_63, %82, %c0_64] : memref<8x16x128xf32, #tpu.memory_space<vmem>>, vector<8x1x128xf32>
    %84 = arith.mulf %80, %75 : vector<8x1x128xf32>
    %85 = arith.addf %84, %83 : vector<8x1x128xf32>
    %c0_65 = arith.constant 0 : index
    %86 = arith.index_cast %c5_i32 : i32 to index
    %c0_66 = arith.constant 0 : index
    %87 = vector.load %arg7[%c0_65, %86, %c0_66] : memref<8x16x128xf32, #tpu.memory_space<vmem>>, vector<8x1x128xf32>
    tpu.vector_store %arg7[%c0_65, %86, %c0_66], %85 {strides = array<i32>} : memref<8x16x128xf32, #tpu.memory_space<vmem>>, vector<8x1x128xf32>,
    %c6_i32 = arith.constant 6 : i32
    %c1_i32_67 = arith.constant 1 : i32
    %88 = arith.subi %c6_i32, %c1_i32_67 : i32
    %c0_68 = arith.constant 0 : index
    %89 = arith.index_cast %88 : i32 to index
    %c0_69 = arith.constant 0 : index
    %90 = vector.load %arg8[%c0_68, %89, %c0_69] : memref<8x16x128xf32, #tpu.memory_space<vmem>>, vector<8x1x128xf32>
    %c1_i32_70 = arith.constant 1 : i32
    %91 = arith.subi %c6_i32, %c1_i32_70 : i32
    %c0_71 = arith.constant 0 : index
    %92 = arith.index_cast %91 : i32 to index
    %c0_72 = arith.constant 0 : index
    %93 = vector.load %arg9[%c0_71, %92, %c0_72] : memref<8x16x128xf32, #tpu.memory_space<vmem>>, vector<8x1x128xf32>
    %94 = arith.mulf %90, %85 : vector<8x1x128xf32>
    %95 = arith.addf %94, %93 : vector<8x1x128xf32>
    %c0_73 = arith.constant 0 : index
    %96 = arith.index_cast %c6_i32 : i32 to index
    %c0_74 = arith.constant 0 : index
    %97 = vector.load %arg7[%c0_73, %96, %c0_74] : memref<8x16x128xf32, #tpu.memory_space<vmem>>, vector<8x1x128xf32>
    tpu.vector_store %arg7[%c0_73, %96, %c0_74], %95 {strides = array<i32>} : memref<8x16x128xf32, #tpu.memory_space<vmem>>, vector<8x1x128xf32>,
    %c7_i32 = arith.constant 7 : i32
    %c1_i32_75 = arith.constant 1 : i32
    %98 = arith.subi %c7_i32, %c1_i32_75 : i32
    %c0_76 = arith.constant 0 : index
    %99 = arith.index_cast %98 : i32 to index
    %c0_77 = arith.constant 0 : index
    %100 = vector.load %arg8[%c0_76, %99, %c0_77] : memref<8x16x128xf32, #tpu.memory_space<vmem>>, vector<8x1x128xf32>
    %c1_i32_78 = arith.constant 1 : i32
    %101 = arith.subi %c7_i32, %c1_i32_78 : i32
    %c0_79 = arith.constant 0 : index
    %102 = arith.index_cast %101 : i32 to index
    %c0_80 = arith.constant 0 : index
    %103 = vector.load %arg9[%c0_79, %102, %c0_80] : memref<8x16x128xf32, #tpu.memory_space<vmem>>, vector<8x1x128xf32>
    %104 = arith.mulf %100, %95 : vector<8x1x128xf32>
    %105 = arith.addf %104, %103 : vector<8x1x128xf32>
    %c0_81 = arith.constant 0 : index
    %106 = arith.index_cast %c7_i32 : i32 to index
    %c0_82 = arith.constant 0 : index
    %107 = vector.load %arg7[%c0_81, %106, %c0_82] : memref<8x16x128xf32, #tpu.memory_space<vmem>>, vector<8x1x128xf32>
    tpu.vector_store %arg7[%c0_81, %106, %c0_82], %105 {strides = array<i32>} : memref<8x16x128xf32, #tpu.memory_space<vmem>>, vector<8x1x128xf32>,
    %c8_i32 = arith.constant 8 : i32
    %c1_i32_83 = arith.constant 1 : i32
    %108 = arith.subi %c8_i32, %c1_i32_83 : i32
    %c0_84 = arith.constant 0 : index
    %109 = arith.index_cast %108 : i32 to index
    %c0_85 = arith.constant 0 : index
    %110 = vector.load %arg8[%c0_84, %109, %c0_85] : memref<8x16x128xf32, #tpu.memory_space<vmem>>, vector<8x1x128xf32>
    %c1_i32_86 = arith.constant 1 : i32
    %111 = arith.subi %c8_i32, %c1_i32_86 : i32
    %c0_87 = arith.constant 0 : index
    %112 = arith.index_cast %111 : i32 to index
    %c0_88 = arith.constant 0 : index
    %113 = vector.load %arg9[%c0_87, %112, %c0_88] : memref<8x16x128xf32, #tpu.memory_space<vmem>>, vector<8x1x128xf32>
    %114 = arith.mulf %110, %105 : vector<8x1x128xf32>
    %115 = arith.addf %114, %113 : vector<8x1x128xf32>
    %c0_89 = arith.constant 0 : index
    %116 = arith.index_cast %c8_i32 : i32 to index
    %c0_90 = arith.constant 0 : index
    %117 = vector.load %arg7[%c0_89, %116, %c0_90] : memref<8x16x128xf32, #tpu.memory_space<vmem>>, vector<8x1x128xf32>
    tpu.vector_store %arg7[%c0_89, %116, %c0_90], %115 {strides = array<i32>} : memref<8x16x128xf32, #tpu.memory_space<vmem>>, vector<8x1x128xf32>,
    %c9_i32 = arith.constant 9 : i32
    %c1_i32_91 = arith.constant 1 : i32
    %118 = arith.subi %c9_i32, %c1_i32_91 : i32
    %c0_92 = arith.constant 0 : index
    %119 = arith.index_cast %118 : i32 to index
    %c0_93 = arith.constant 0 : index
    %120 = vector.load %arg8[%c0_92, %119, %c0_93] : memref<8x16x128xf32, #tpu.memory_space<vmem>>, vector<8x1x128xf32>
    %c1_i32_94 = arith.constant 1 : i32
    %121 = arith.subi %c9_i32, %c1_i32_94 : i32
    %c0_95 = arith.constant 0 : index
    %122 = arith.index_cast %121 : i32 to index
    %c0_96 = arith.constant 0 : index
    %123 = vector.load %arg9[%c0_95, %122, %c0_96] : memref<8x16x128xf32, #tpu.memory_space<vmem>>, vector<8x1x128xf32>
    %124 = arith.mulf %120, %115 : vector<8x1x128xf32>
    %125 = arith.addf %124, %123 : vector<8x1x128xf32>
    %c0_97 = arith.constant 0 : index
    %126 = arith.index_cast %c9_i32 : i32 to index
    %c0_98 = arith.constant 0 : index
    %127 = vector.load %arg7[%c0_97, %126, %c0_98] : memref<8x16x128xf32, #tpu.memory_space<vmem>>, vector<8x1x128xf32>
    tpu.vector_store %arg7[%c0_97, %126, %c0_98], %125 {strides = array<i32>} : memref<8x16x128xf32, #tpu.memory_space<vmem>>, vector<8x1x128xf32>,
    %c10_i32 = arith.constant 10 : i32
    %c1_i32_99 = arith.constant 1 : i32
    %128 = arith.subi %c10_i32, %c1_i32_99 : i32
    %c0_100 = arith.constant 0 : index
    %129 = arith.index_cast %128 : i32 to index
    %c0_101 = arith.constant 0 : index
    %130 = vector.load %arg8[%c0_100, %129, %c0_101] : memref<8x16x128xf32, #tpu.memory_space<vmem>>, vector<8x1x128xf32>
    %c1_i32_102 = arith.constant 1 : i32
    %131 = arith.subi %c10_i32, %c1_i32_102 : i32
    %c0_103 = arith.constant 0 : index
    %132 = arith.index_cast %131 : i32 to index
    %c0_104 = arith.constant 0 : index
    %133 = vector.load %arg9[%c0_103, %132, %c0_104] : memref<8x16x128xf32, #tpu.memory_space<vmem>>, vector<8x1x128xf32>
    %134 = arith.mulf %130, %125 : vector<8x1x128xf32>
    %135 = arith.addf %134, %133 : vector<8x1x128xf32>
    %c0_105 = arith.constant 0 : index
    %136 = arith.index_cast %c10_i32 : i32 to index
    %c0_106 = arith.constant 0 : index
    %137 = vector.load %arg7[%c0_105, %136, %c0_106] : memref<8x16x128xf32, #tpu.memory_space<vmem>>, vector<8x1x128xf32>
    tpu.vector_store %arg7[%c0_105, %136, %c0_106], %135 {strides = array<i32>} : memref<8x16x128xf32, #tpu.memory_space<vmem>>, vector<8x1x128xf32>,
    %c11_i32 = arith.constant 11 : i32
    %c1_i32_107 = arith.constant 1 : i32
    %138 = arith.subi %c11_i32, %c1_i32_107 : i32
    %c0_108 = arith.constant 0 : index
    %139 = arith.index_cast %138 : i32 to index
    %c0_109 = arith.constant 0 : index
    %140 = vector.load %arg8[%c0_108, %139, %c0_109] : memref<8x16x128xf32, #tpu.memory_space<vmem>>, vector<8x1x128xf32>
    %c1_i32_110 = arith.constant 1 : i32
    %141 = arith.subi %c11_i32, %c1_i32_110 : i32
    %c0_111 = arith.constant 0 : index
    %142 = arith.index_cast %141 : i32 to index
    %c0_112 = arith.constant 0 : index
    %143 = vector.load %arg9[%c0_111, %142, %c0_112] : memref<8x16x128xf32, #tpu.memory_space<vmem>>, vector<8x1x128xf32>
    %144 = arith.mulf %140, %135 : vector<8x1x128xf32>
    %145 = arith.addf %144, %143 : vector<8x1x128xf32>
    %c0_113 = arith.constant 0 : index
    %146 = arith.index_cast %c11_i32 : i32 to index
    %c0_114 = arith.constant 0 : index
    %147 = vector.load %arg7[%c0_113, %146, %c0_114] : memref<8x16x128xf32, #tpu.memory_space<vmem>>, vector<8x1x128xf32>
    tpu.vector_store %arg7[%c0_113, %146, %c0_114], %145 {strides = array<i32>} : memref<8x16x128xf32, #tpu.memory_space<vmem>>, vector<8x1x128xf32>,
    %c12_i32 = arith.constant 12 : i32
    %c1_i32_115 = arith.constant 1 : i32
    %148 = arith.subi %c12_i32, %c1_i32_115 : i32
    %c0_116 = arith.constant 0 : index
    %149 = arith.index_cast %148 : i32 to index
    %c0_117 = arith.constant 0 : index
    %150 = vector.load %arg8[%c0_116, %149, %c0_117] : memref<8x16x128xf32, #tpu.memory_space<vmem>>, vector<8x1x128xf32>
    %c1_i32_118 = arith.constant 1 : i32
    %151 = arith.subi %c12_i32, %c1_i32_118 : i32
    %c0_119 = arith.constant 0 : index
    %152 = arith.index_cast %151 : i32 to index
    %c0_120 = arith.constant 0 : index
    %153 = vector.load %arg9[%c0_119, %152, %c0_120] : memref<8x16x128xf32, #tpu.memory_space<vmem>>, vector<8x1x128xf32>
    %154 = arith.mulf %150, %145 : vector<8x1x128xf32>
    %155 = arith.addf %154, %153 : vector<8x1x128xf32>
    %c0_121 = arith.constant 0 : index
    %156 = arith.index_cast %c12_i32 : i32 to index
    %c0_122 = arith.constant 0 : index
    %157 = vector.load %arg7[%c0_121, %156, %c0_122] : memref<8x16x128xf32, #tpu.memory_space<vmem>>, vector<8x1x128xf32>
    tpu.vector_store %arg7[%c0_121, %156, %c0_122], %155 {strides = array<i32>} : memref<8x16x128xf32, #tpu.memory_space<vmem>>, vector<8x1x128xf32>,
    %c13_i32 = arith.constant 13 : i32
    %c1_i32_123 = arith.constant 1 : i32
    %158 = arith.subi %c13_i32, %c1_i32_123 : i32
    %c0_124 = arith.constant 0 : index
    %159 = arith.index_cast %158 : i32 to index
    %c0_125 = arith.constant 0 : index
    %160 = vector.load %arg8[%c0_124, %159, %c0_125] : memref<8x16x128xf32, #tpu.memory_space<vmem>>, vector<8x1x128xf32>
    %c1_i32_126 = arith.constant 1 : i32
    %161 = arith.subi %c13_i32, %c1_i32_126 : i32
    %c0_127 = arith.constant 0 : index
    %162 = arith.index_cast %161 : i32 to index
    %c0_128 = arith.constant 0 : index
    %163 = vector.load %arg9[%c0_127, %162, %c0_128] : memref<8x16x128xf32, #tpu.memory_space<vmem>>, vector<8x1x128xf32>
    %164 = arith.mulf %160, %155 : vector<8x1x128xf32>
    %165 = arith.addf %164, %163 : vector<8x1x128xf32>
    %c0_129 = arith.constant 0 : index
    %166 = arith.index_cast %c13_i32 : i32 to index
    %c0_130 = arith.constant 0 : index
    %167 = vector.load %arg7[%c0_129, %166, %c0_130] : memref<8x16x128xf32, #tpu.memory_space<vmem>>, vector<8x1x128xf32>
    tpu.vector_store %arg7[%c0_129, %166, %c0_130], %165 {strides = array<i32>} : memref<8x16x128xf32, #tpu.memory_space<vmem>>, vector<8x1x128xf32>,
    %c14_i32 = arith.constant 14 : i32
    %c1_i32_131 = arith.constant 1 : i32
    %168 = arith.subi %c14_i32, %c1_i32_131 : i32
    %c0_132 = arith.constant 0 : index
    %169 = arith.index_cast %168 : i32 to index
    %c0_133 = arith.constant 0 : index
    %170 = vector.load %arg8[%c0_132, %169, %c0_133] : memref<8x16x128xf32, #tpu.memory_space<vmem>>, vector<8x1x128xf32>
    %c1_i32_134 = arith.constant 1 : i32
    %171 = arith.subi %c14_i32, %c1_i32_134 : i32
    %c0_135 = arith.constant 0 : index
    %172 = arith.index_cast %171 : i32 to index
    %c0_136 = arith.constant 0 : index
    %173 = vector.load %arg9[%c0_135, %172, %c0_136] : memref<8x16x128xf32, #tpu.memory_space<vmem>>, vector<8x1x128xf32>
    %174 = arith.mulf %170, %165 : vector<8x1x128xf32>
    %175 = arith.addf %174, %173 : vector<8x1x128xf32>
    %c0_137 = arith.constant 0 : index
    %176 = arith.index_cast %c14_i32 : i32 to index
    %c0_138 = arith.constant 0 : index
    %177 = vector.load %arg7[%c0_137, %176, %c0_138] : memref<8x16x128xf32, #tpu.memory_space<vmem>>, vector<8x1x128xf32>
    tpu.vector_store %arg7[%c0_137, %176, %c0_138], %175 {strides = array<i32>} : memref<8x16x128xf32, #tpu.memory_space<vmem>>, vector<8x1x128xf32>,
    %c15_i32 = arith.constant 15 : i32
    %c1_i32_139 = arith.constant 1 : i32
    %178 = arith.subi %c15_i32, %c1_i32_139 : i32
    %c0_140 = arith.constant 0 : index
    %179 = arith.index_cast %178 : i32 to index
    %c0_141 = arith.constant 0 : index
    %180 = vector.load %arg8[%c0_140, %179, %c0_141] : memref<8x16x128xf32, #tpu.memory_space<vmem>>, vector<8x1x128xf32>
    %c1_i32_142 = arith.constant 1 : i32
    %181 = arith.subi %c15_i32, %c1_i32_142 : i32
    %c0_143 = arith.constant 0 : index
    %182 = arith.index_cast %181 : i32 to index
    %c0_144 = arith.constant 0 : index
    %183 = vector.load %arg9[%c0_143, %182, %c0_144] : memref<8x16x128xf32, #tpu.memory_space<vmem>>, vector<8x1x128xf32>
    %184 = arith.mulf %180, %175 : vector<8x1x128xf32>
    %185 = arith.addf %184, %183 : vector<8x1x128xf32>
    %c0_145 = arith.constant 0 : index
    %186 = arith.index_cast %c15_i32 : i32 to index
    %c0_146 = arith.constant 0 : index
    %187 = vector.load %arg7[%c0_145, %186, %c0_146] : memref<8x16x128xf32, #tpu.memory_space<vmem>>, vector<8x1x128xf32>
    tpu.vector_store %arg7[%c0_145, %186, %c0_146], %185 {strides = array<i32>} : memref<8x16x128xf32, #tpu.memory_space<vmem>>, vector<8x1x128xf32>,
    %c15_i32_147 = arith.constant 15 : i32
    return
  }
  func.func @transform_0(%arg0: i32) -> (i32, i32, i32) {
    %c0_i32 = arith.constant 0 : i32
    %c0_i32_0 = arith.constant 0 : i32
    %c0_i32_1 = arith.constant 0 : i32
    return %arg0, %c0_i32, %c0_i32_0 : i32, i32, i32
  }
  func.func @transform_1(%arg0: i32) -> (i32, i32, i32) {
    %c0_i32 = arith.constant 0 : i32
    %c0_i32_0 = arith.constant 0 : i32
    %c0_i32_1 = arith.constant 0 : i32
    return %arg0, %c0_i32, %c0_i32_0 : i32, i32, i32
  }
  func.func @transform_2(%arg0: i32) -> (i32, i32) {
    %c0_i32 = arith.constant 0 : i32
    %c0_i32_0 = arith.constant 0 : i32
    %c0_i32_1 = arith.constant 0 : i32
    return %c0_i32, %c0_i32_0 : i32, i32
  }
  func.func @transform_3(%arg0: i32) -> (i32, i32) {
    %c0_i32 = arith.constant 0 : i32
    %c0_i32_0 = arith.constant 0 : i32
    %c0_i32_1 = arith.constant 0 : i32
    return %c0_i32, %c0_i32_0 : i32, i32
  }
  func.func @transform_4(%arg0: i32) -> (i32, i32) {
    %c0_i32 = arith.constant 0 : i32
    %c0_i32_0 = arith.constant 0 : i32
    %c0_i32_1 = arith.constant 0 : i32
    return %c0_i32, %c0_i32_0 : i32, i32
  }
  func.func @transform_5(%arg0: i32) -> (i32, i32, i32) {
    %c0_i32 = arith.constant 0 : i32
    %c0_i32_0 = arith.constant 0 : i32
    %c0_i32_1 = arith.constant 0 : i32
    %c0_i32_2 = arith.constant 0 : i32
    return %c0_i32, %c0_i32_0, %c0_i32_1 : i32, i32, i32
  }
  func.func @transform_6(%arg0: i32) -> (i32, i32, i32) {
    %c0_i32 = arith.constant 0 : i32
    %c0_i32_0 = arith.constant 0 : i32
    %c0_i32_1 = arith.constant 0 : i32
    return %arg0, %c0_i32, %c0_i32_0 : i32, i32, i32
  }
}

</mosaic_0001>

<llo_original>
// kernel: tpu_custom_call.1
$region0: #{tpu_custom_call.1}
  #allocation0 [shape = 'u32[]', space=smem, size = 0x4, offset = 0x4, fixed_abs, tag = 'smem constant byte address 0x4 - core index']
  #allocation1 [shape = 'u32[144,128]{1,0:T(1,128)}', space=vmem, size = 0x12000, scoped, tag = 'internal scratch']
  #allocation2 [shape = 'f32[8,16,128]{2,1,0:T(8,128)}', space=vmem, size = 0x10000, scoped, tag = 'scratch operand']
  #allocation3 [shape = 'f32[8,16,128]{2,1,0:T(8,128)}', space=vmem, size = 0x10000, scoped, tag = 'scratch operand']
  %s0 = inlined_call_operand.hbm [shape: f32[8,16,128], index: 0, kind: input, shape index: {}]
  %s1 = inlined_call_operand.hbm [shape: f32[8,16,128], index: 1, kind: input, shape index: {}]
  %s2 = inlined_call_operand.hbm [shape: f32[128,384], index: 2, kind: input, shape index: {}]
  %s3 = inlined_call_operand.hbm [shape: f32[128,384], index: 3, kind: input, shape index: {}]
  %s4 = inlined_call_operand.vmem [shape: f32[1,384], index: 4, kind: input, shape index: {}]
  %s5 = inlined_call_operand.vmem [shape: f32[1,1,128], index: 5, kind: input, shape index: {}]
  %s6 = inlined_call_operand.hbm [shape: f32[8,16,128], index: 6, kind: output, shape index: {}]
  %s7 = sld [smem:[#allocation0]]
  $region50: #{tpu_custom_call.1} parent=0
    _
  %s9 = ssub.s32 1, %s7
  %s10 = scalar_select 0, %s9, %s7
  $region1: #{tpu_custom_call.1} parent=0
    #allocation4 [shape = 'u8[65536]{0}', space=vmem, size = 0x10000, scoped, tag = 'input window, operand 0, single buffered']
    #allocation5 [shape = 's32[1]{0}', space=sflag, size = 0x4, scoped, tag = 'scoped memory for tpu_custom_call.1']
    #allocation6 [shape = 's32[1]{0}', space=sflag, size = 0x4, scoped, tag = 'scoped memory for tpu_custom_call.1']
    #allocation7 [shape = 'u8[65536]{0}', space=vmem, size = 0x10000, scoped, tag = 'input window, operand 1, single buffered']
    #allocation8 [shape = 's32[1]{0}', space=sflag, size = 0x4, scoped, tag = 'scoped memory for tpu_custom_call.1']
    #allocation9 [shape = 'u8[196608]{0}', space=vmem, size = 0x30000, scoped, tag = 'input window, operand 2, single buffered']
    #allocation10 [shape = 'u8[196608]{0}', space=vmem, size = 0x30000, scoped, tag = 'input window, operand 3, single buffered']
    #allocation11 [shape = 's32[1]{0}', space=sflag, size = 0x4, scoped, tag = 'scoped memory for tpu_custom_call.1']
    #allocation12 [shape = 'u8[65536]{0}', space=vmem, size = 0x10000, scoped, tag = 'output window, operand 0, single buffered']
    %11 = vsyncpa [#allocation5], 0
    %12 = vsyncpa [#allocation8], 0
    %13 = vsyncpa [#allocation11], 0
    %14 = vsyncpa [#allocation6], 0
    // Predicated region
    $region2: #{tpu_custom_call.1} parent=1 // pred_check
      _
    $region3: #{tpu_custom_call.1} parent=1 // pred_check_branch
      %16 = sbr.rel (0) target = $region5
    $region4: #{tpu_custom_call.1} parent=1 // pred_region
      %s18 = ssub.s32 2048, 2048
      %19 = vsyncadd [#allocation5], %s18
      %s20 = sshll.u32 [#allocation4], 4
      %s21 = int_to_ptr.vmem [resolvable:$true] %s20
      %26 = dma.hbm_to_vmem [thread:$0]  %s0, 2048, %s21, [#allocation5], 128, 128, 8
    $region5: #{tpu_custom_call.1} parent=1 // pred_fallthru
      _
    // Predicated region
    $region6: #{tpu_custom_call.1} parent=1 // pred_check
      _
    $region7: #{tpu_custom_call.1} parent=1 // pred_check_branch
      %28 = sbr.rel (0) target = $region9
    $region8: #{tpu_custom_call.1} parent=1 // pred_region
      %s30 = ssub.s32 2048, 2048
      %31 = vsyncadd [#allocation8], %s30
      %s32 = sshll.u32 [#allocation7], 4
      %s33 = int_to_ptr.vmem [resolvable:$true] %s32
      %38 = dma.hbm_to_vmem [thread:$0]  %s1, 2048, %s33, [#allocation8], 128, 128, 8
    $region9: #{tpu_custom_call.1} parent=1 // pred_fallthru
      _
    // Predicated region
    $region10: #{tpu_custom_call.1} parent=1 // pred_check
      _
    $region11: #{tpu_custom_call.1} parent=1 // pred_check_branch
      %40 = sbr.rel (0) target = $region13
    $region12: #{tpu_custom_call.1} parent=1 // pred_region
      %s42 = ssub.s32 6144, 6144
      %43 = vsyncadd [#allocation8], %s42
      %s44 = sshll.u32 [#allocation9], 4
      %s45 = int_to_ptr.vmem [resolvable:$true] %s44
      %50 = dma.hbm_to_vmem [thread:$0]  %s2, 6144, %s45, [#allocation8], 384, 384, 24
    $region13: #{tpu_custom_call.1} parent=1 // pred_fallthru
      _
    // Predicated region
    $region14: #{tpu_custom_call.1} parent=1 // pred_check
      _
    $region15: #{tpu_custom_call.1} parent=1 // pred_check_branch
      %52 = sbr.rel (0) target = $region17
    $region16: #{tpu_custom_call.1} parent=1 // pred_region
      %s54 = ssub.s32 6144, 6144
      %55 = vsyncadd [#allocation11], %s54
      %s56 = sshll.u32 [#allocation10], 4
      %s57 = int_to_ptr.vmem [resolvable:$true] %s56
      %62 = dma.hbm_to_vmem [thread:$0]  %s3, 6144, %s57, [#allocation11], 384, 384, 24
    $region17: #{tpu_custom_call.1} parent=1 // pred_fallthru
      _
    // Predicated region
    $region18: #{tpu_custom_call.1} parent=1 // pred_check
      _
    $region19: #{tpu_custom_call.1} parent=1 // pred_check_branch
      %64 = sbr.rel (0) target = $region21
    $region20: #{tpu_custom_call.1} parent=1 // pred_region
      _
    $region21: #{tpu_custom_call.1} parent=1 // pred_fallthru
      _
    // Predicated region
    $region22: #{tpu_custom_call.1} parent=1 // pred_check
      _
    $region23: #{tpu_custom_call.1} parent=1 // pred_check_branch
      %66 = sbr.rel (0) target = $region25
    $region24: #{tpu_custom_call.1} parent=1 // pred_region
      _
    $region25: #{tpu_custom_call.1} parent=1 // pred_fallthru
      _
    // Predicated region
    $region26: #{tpu_custom_call.1} parent=1 // pred_check
      _
    $region27: #{tpu_custom_call.1} parent=1 // pred_check_branch
      %68 = sbr.rel (0) target = $region29
    $region28: #{tpu_custom_call.1} parent=1 // pred_region
      %69 = dma.done [#allocation5], 2048
    $region29: #{tpu_custom_call.1} parent=1 // pred_fallthru
      _
    // Predicated region
    $region30: #{tpu_custom_call.1} parent=1 // pred_check
      _
    $region31: #{tpu_custom_call.1} parent=1 // pred_check_branch
      %71 = sbr.rel (0) target = $region33
    $region32: #{tpu_custom_call.1} parent=1 // pred_region
      %72 = dma.done [#allocation8], 2048
    $region33: #{tpu_custom_call.1} parent=1 // pred_fallthru
      _
    // Predicated region
    $region34: #{tpu_custom_call.1} parent=1 // pred_check
      _
    $region35: #{tpu_custom_call.1} parent=1 // pred_check_branch
      %74 = sbr.rel (0) target = $region37
    $region36: #{tpu_custom_call.1} parent=1 // pred_region
      %75 = dma.done [#allocation8], 6144
    $region37: #{tpu_custom_call.1} parent=1 // pred_fallthru
      _
    // Predicated region
    $region38: #{tpu_custom_call.1} parent=1 // pred_check
      _
    $region39: #{tpu_custom_call.1} parent=1 // pred_check_branch
      %77 = sbr.rel (0) target = $region41
    $region40: #{tpu_custom_call.1} parent=1 // pred_region
      %78 = dma.done [#allocation11], 6144
    $region41: #{tpu_custom_call.1} parent=1 // pred_fallthru
      _
    %v79 = vld [vmem:[#allocation9] sm:$0xff]
    %v80 = vld [vmem:[#allocation9 + $0x8] sm:$0xff]
    %v81 = vld [vmem:[#allocation9 + $0x10] sm:$0xff]
    %v82 = vld [vmem:[#allocation9 + $0x18] sm:$0xff]
    %v83 = vld [vmem:[#allocation9 + $0x20] sm:$0xff]
    %v84 = vld [vmem:[#allocation9 + $0x28] sm:$0xff]
    %v85 = vld [vmem:[#allocation9 + $0x30] sm:$0xff]
    %v86 = vld [vmem:[#allocation9 + $0x38] sm:$0xff]
    %v87 = vld [vmem:[#allocation9 + $0x40] sm:$0xff]
    %v88 = vld [vmem:[#allocation9 + $0x48] sm:$0xff]
    %v89 = vld [vmem:[#allocation9 + $0x50] sm:$0xff]
    %v90 = vld [vmem:[#allocation9 + $0x58] sm:$0xff]
    %v91 = vld [vmem:[#allocation9 + $0x60] sm:$0xff]
    %v92 = vld [vmem:[#allocation9 + $0x68] sm:$0xff]
    %v93 = vld [vmem:[#allocation9 + $0x70] sm:$0xff]
    %v94 = vld [vmem:[#allocation9 + $0x78] sm:$0xff]
    %v95 = vld [vmem:[#allocation9 + $0x80] sm:$0xff]
    %v96 = vld [vmem:[#allocation9 + $0x88] sm:$0xff]
    %v97 = vld [vmem:[#allocation9 + $0x90] sm:$0xff]
    %v98 = vld [vmem:[#allocation9 + $0x98] sm:$0xff]
    %v99 = vld [vmem:[#allocation9 + $0xa0] sm:$0xff]
    %v100 = vld [vmem:[#allocation9 + $0xa8] sm:$0xff]
    %v101 = vld [vmem:[#allocation9 + $0xb0] sm:$0xff]
    %v102 = vld [vmem:[#allocation9 + $0xb8] sm:$0xff]
    %v103 = vld [vmem:[#allocation9 + $0xc0] sm:$0xff]
    %v104 = vld [vmem:[#allocation9 + $0xc8] sm:$0xff]
    %v105 = vld [vmem:[#allocation9 + $0xd0] sm:$0xff]
    %v106 = vld [vmem:[#allocation9 + $0xd8] sm:$0xff]
    %v107 = vld [vmem:[#allocation9 + $0xe0] sm:$0xff]
    %v108 = vld [vmem:[#allocation9 + $0xe8] sm:$0xff]
    %v109 = vld [vmem:[#allocation9 + $0xf0] sm:$0xff]
    %v110 = vld [vmem:[#allocation9 + $0xf8] sm:$0xff]
    %v111 = vld [vmem:[#allocation9 + $0x100] sm:$0xff]
    %v112 = vld [vmem:[#allocation9 + $0x108] sm:$0xff]
    %v113 = vld [vmem:[#allocation9 + $0x110] sm:$0xff]
    %v114 = vld [vmem:[#allocation9 + $0x118] sm:$0xff]
    %v115 = vld [vmem:[#allocation9 + $0x120] sm:$0xff]
    %v116 = vld [vmem:[#allocation9 + $0x128] sm:$0xff]
    %v117 = vld [vmem:[#allocation9 + $0x130] sm:$0xff]
    %v118 = vld [vmem:[#allocation9 + $0x138] sm:$0xff]
    %v119 = vld [vmem:[#allocation9 + $0x140] sm:$0xff]
    %v120 = vld [vmem:[#allocation9 + $0x148] sm:$0xff]
    %v121 = vld [vmem:[#allocation9 + $0x150] sm:$0xff]
    %v122 = vld [vmem:[#allocation9 + $0x158] sm:$0xff]
    %v123 = vld [vmem:[#allocation9 + $0x160] sm:$0xff]
    %v124 = vld [vmem:[#allocation9 + $0x168] sm:$0xff]
    %v125 = vld [vmem:[#allocation9 + $0x170] sm:$0xff]
    %v126 = vld [vmem:[#allocation9 + $0x178] sm:$0xff]
    %v127 = vld [vmem:[#allocation10] sm:$0xff]
    %v128 = vld [vmem:[#allocation10 + $0x8] sm:$0xff]
    %v129 = vld [vmem:[#allocation10 + $0x10] sm:$0xff]
    %v130 = vld [vmem:[#allocation10 + $0x18] sm:$0xff]
    %v131 = vld [vmem:[#allocation10 + $0x20] sm:$0xff]
    %v132 = vld [vmem:[#allocation10 + $0x28] sm:$0xff]
    %v133 = vld [vmem:[#allocation10 + $0x30] sm:$0xff]
    %v134 = vld [vmem:[#allocation10 + $0x38] sm:$0xff]
    %v135 = vld [vmem:[#allocation10 + $0x40] sm:$0xff]
    %v136 = vld [vmem:[#allocation10 + $0x48] sm:$0xff]
    %v137 = vld [vmem:[#allocation10 + $0x50] sm:$0xff]
    %v138 = vld [vmem:[#allocation10 + $0x58] sm:$0xff]
    %v139 = vld [vmem:[#allocation10 + $0x60] sm:$0xff]
    %v140 = vld [vmem:[#allocation10 + $0x68] sm:$0xff]
    %v141 = vld [vmem:[#allocation10 + $0x70] sm:$0xff]
    %v142 = vld [vmem:[#allocation10 + $0x78] sm:$0xff]
    %v143 = vld [vmem:[#allocation10 + $0x80] sm:$0xff]
    %v144 = vld [vmem:[#allocation10 + $0x88] sm:$0xff]
    %v145 = vld [vmem:[#allocation10 + $0x90] sm:$0xff]
    %v146 = vld [vmem:[#allocation10 + $0x98] sm:$0xff]
    %v147 = vld [vmem:[#allocation10 + $0xa0] sm:$0xff]
    %v148 = vld [vmem:[#allocation10 + $0xa8] sm:$0xff]
    %v149 = vld [vmem:[#allocation10 + $0xb0] sm:$0xff]
    %v150 = vld [vmem:[#allocation10 + $0xb8] sm:$0xff]
    %v151 = vld [vmem:[#allocation10 + $0xc0] sm:$0xff]
    %v152 = vld [vmem:[#allocation10 + $0xc8] sm:$0xff]
    %v153 = vld [vmem:[#allocation10 + $0xd0] sm:$0xff]
    %v154 = vld [vmem:[#allocation10 + $0xd8] sm:$0xff]
    %v155 = vld [vmem:[#allocation10 + $0xe0] sm:$0xff]
    %v156 = vld [vmem:[#allocation10 + $0xe8] sm:$0xff]
    %v157 = vld [vmem:[#allocation10 + $0xf0] sm:$0xff]
    %v158 = vld [vmem:[#allocation10 + $0xf8] sm:$0xff]
    %v159 = vld [vmem:[#allocation10 + $0x100] sm:$0xff]
    %v160 = vld [vmem:[#allocation10 + $0x108] sm:$0xff]
    %v161 = vld [vmem:[#allocation10 + $0x110] sm:$0xff]
    %v162 = vld [vmem:[#allocation10 + $0x118] sm:$0xff]
    %v163 = vld [vmem:[#allocation10 + $0x120] sm:$0xff]
    %v164 = vld [vmem:[#allocation10 + $0x128] sm:$0xff]
    %v165 = vld [vmem:[#allocation10 + $0x130] sm:$0xff]
    %v166 = vld [vmem:[#allocation10 + $0x138] sm:$0xff]
    %v167 = vld [vmem:[#allocation10 + $0x140] sm:$0xff]
    %v168 = vld [vmem:[#allocation10 + $0x148] sm:$0xff]
    %v169 = vld [vmem:[#allocation10 + $0x150] sm:$0xff]
    %v170 = vld [vmem:[#allocation10 + $0x158] sm:$0xff]
    %v171 = vld [vmem:[#allocation10 + $0x160] sm:$0xff]
    %v172 = vld [vmem:[#allocation10 + $0x168] sm:$0xff]
    %v173 = vld [vmem:[#allocation10 + $0x170] sm:$0xff]
    %v174 = vld [vmem:[#allocation10 + $0x178] sm:$0xff]
    %v175 = vld [vmem:[%s4] sm:$0x7]
    %v176 = vld [vmem:[#allocation4] sm:$0xff]
    %v177 = vld [vmem:[#allocation4 + $0x8] sm:$0xff]
    %v178 = vld [vmem:[#allocation4 + $0x10] sm:$0xff]
    %v179 = vld [vmem:[#allocation4 + $0x18] sm:$0xff]
    %v180 = vld [vmem:[#allocation4 + $0x20] sm:$0xff]
    %v181 = vld [vmem:[#allocation4 + $0x28] sm:$0xff]
    %v182 = vld [vmem:[#allocation4 + $0x30] sm:$0xff]
    %v183 = vld [vmem:[#allocation4 + $0x38] sm:$0xff]
    %v184 = vld [vmem:[#allocation4 + $0x40] sm:$0xff]
    %v185 = vld [vmem:[#allocation4 + $0x48] sm:$0xff]
    %v186 = vld [vmem:[#allocation4 + $0x50] sm:$0xff]
    %v187 = vld [vmem:[#allocation4 + $0x58] sm:$0xff]
    %v188 = vld [vmem:[#allocation4 + $0x60] sm:$0xff]
    %v189 = vld [vmem:[#allocation4 + $0x68] sm:$0xff]
    %v190 = vld [vmem:[#allocation4 + $0x70] sm:$0xff]
    %v191 = vld [vmem:[#allocation4 + $0x78] sm:$0xff]
    %v192 = vld [vmem:[#allocation7] sm:$0xff]
    %v193 = vld [vmem:[#allocation7 + $0x8] sm:$0xff]
    %v194 = vld [vmem:[#allocation7 + $0x10] sm:$0xff]
    %v195 = vld [vmem:[#allocation7 + $0x18] sm:$0xff]
    %v196 = vld [vmem:[#allocation7 + $0x20] sm:$0xff]
    %v197 = vld [vmem:[#allocation7 + $0x28] sm:$0xff]
    %v198 = vld [vmem:[#allocation7 + $0x30] sm:$0xff]
    %v199 = vld [vmem:[#allocation7 + $0x38] sm:$0xff]
    %v200 = vld [vmem:[#allocation7 + $0x40] sm:$0xff]
    %v201 = vld [vmem:[#allocation7 + $0x48] sm:$0xff]
    %v202 = vld [vmem:[#allocation7 + $0x50] sm:$0xff]
    %v203 = vld [vmem:[#allocation7 + $0x58] sm:$0xff]
    %v204 = vld [vmem:[#allocation7 + $0x60] sm:$0xff]
    %v205 = vld [vmem:[#allocation7 + $0x68] sm:$0xff]
    %v206 = vld [vmem:[#allocation7 + $0x70] sm:$0xff]
    %v207 = vld [vmem:[#allocation7 + $0x78] sm:$0xff]
    %208 = vmatprep.subr.mxu0 %v173
    %209 = vmatpush1.msra.mxu0 %v172
    %210 = vmatprep.subr.mxu0 %v170
    %211 = vmatpush1.msra.mxu0 %v169
    %212 = vmatprep.subr.mxu0 %v167
    %213 = vmatpush1.msra.mxu0 %v166
    %214 = vmatprep.subr.mxu0 %v164
    %215 = vmatpush1.msra.mxu0 %v163
    %216 = vmatprep.subr.mxu0 %v161
    %217 = vmatpush1.msra.mxu0 %v160
    %218 = vmatprep.subr.mxu0 %v158
    %219 = vmatpush1.msra.mxu0 %v157
    %220 = vmatprep.subr.mxu0 %v155
    %221 = vmatpush1.msra.mxu0 %v154
    %222 = vmatprep.subr.mxu0 %v152
    %223 = vmatpush1.msra.mxu0 %v151
    %224 = vmatprep.subr.mxu0 %v149
    %225 = vmatpush1.msra.mxu0 %v148
    %226 = vmatprep.subr.mxu0 %v146
    %227 = vmatpush1.msra.mxu0 %v145
    %228 = vmatprep.subr.mxu0 %v143
    %229 = vmatpush1.msra.mxu0 %v142
    %230 = vmatprep.subr.mxu0 %v140
    %231 = vmatpush1.msra.mxu0 %v139
    %232 = vmatprep.subr.mxu0 %v137
    %233 = vmatpush1.msra.mxu0 %v136
    %234 = vmatprep.subr.mxu0 %v134
    %235 = vmatpush1.msra.mxu0 %v133
    %236 = vmatprep.subr.mxu0 %v131
    %237 = vmatpush1.msra.mxu0 %v130
    %238 = vmatprep.subr.mxu0 %v128
    %239 = vmatpush1.msra.mxu0 %v127
    %240 = vmatprep.subr.mxu0 0.0
    %241 = vmatpush2.msra.mxu0 0.0
    %242 = vmatprep.subr.mxu0 0.0
    %243 = vmatpush2.msra.mxu0 0.0
    %244 = vmatprep.subr.mxu0 0.0
    %245 = vmatpush2.msra.mxu0 0.0
    %246 = vmatprep.subr.mxu0 0.0
    %247 = vmatpush2.msra.mxu0 0.0
    %248 = vmatprep.subr.mxu0 0.0
    %249 = vmatpush2.msra.mxu0 0.0
    %250 = vmatprep.subr.mxu0 0.0
    %251 = vmatpush2.msra.mxu0 0.0
    %252 = vmatprep.subr.mxu0 0.0
    %253 = vmatpush2.msra.mxu0 0.0
    %254 = vmatprep.subr.mxu0 0.0
    %255 = vmatpush2.msra.mxu0 0.0
    %256 = vmatprep.subr.mxu0 0.0
    %257 = vmatpush2.msra.mxu0 0.0
    %258 = vmatprep.subr.mxu0 0.0
    %259 = vmatpush2.msra.mxu0 0.0
    %260 = vmatprep.subr.mxu0 0.0
    %261 = vmatpush2.msra.mxu0 0.0
    %262 = vmatprep.subr.mxu0 0.0
    %263 = vmatpush2.msra.mxu0 0.0
    %264 = vmatprep.subr.mxu0 0.0
    %265 = vmatpush2.msra.mxu0 0.0
    %266 = vmatprep.subr.mxu0 0.0
    %267 = vmatpush2.msra.mxu0 0.0
    %268 = vmatprep.subr.mxu0 0.0
    %269 = vmatpush2.msra.mxu0 0.0
    %270 = vmatprep.subr.mxu0 0.0
    %271 = vmatpush2.msra.mxu0 0.0
    %272 = vmatprep.mubr.f32.mxu0 0.0
    %273 = vmatmul.mubr.f32.gmra.mxu0 %v192
    %v274 = vpop.f32.mrf.mxu0
    %v275 = vadd.f32 0.0, %v274
    %v276 = vpop.f32.mrf.mxu0
    %v277 = vadd.f32 0.0, %v276
    %278 = vmatprep.mubr.f32.mxu0 0.0
    %279 = vmatmul.mubr.f32.gmra.mxu0 %v193
    %v280 = vpop.f32.mrf.mxu0
    %v281 = vadd.f32 0.0, %v280
    %v282 = vpop.f32.mrf.mxu0
    %v283 = vadd.f32 0.0, %v282
    %284 = vmatprep.mubr.f32.mxu0 0.0
    %285 = vmatmul.mubr.f32.gmra.mxu0 %v194
    %v286 = vpop.f32.mrf.mxu0
    %v287 = vadd.f32 0.0, %v286
    %v288 = vpop.f32.mrf.mxu0
    %v289 = vadd.f32 0.0, %v288
    %290 = vmatprep.mubr.f32.mxu0 0.0
    %291 = vmatmul.mubr.f32.gmra.mxu0 %v195
    %v292 = vpop.f32.mrf.mxu0
    %v293 = vadd.f32 0.0, %v292
    %v294 = vpop.f32.mrf.mxu0
    %v295 = vadd.f32 0.0, %v294
    %296 = vmatprep.mubr.f32.mxu0 0.0
    %297 = vmatmul.mubr.f32.gmra.mxu0 %v196
    %v298 = vpop.f32.mrf.mxu0
    %v299 = vadd.f32 0.0, %v298
    %v300 = vpop.f32.mrf.mxu0
    %v301 = vadd.f32 0.0, %v300
    %302 = vmatprep.mubr.f32.mxu0 0.0
    %303 = vmatmul.mubr.f32.gmra.mxu0 %v197
    %v304 = vpop.f32.mrf.mxu0
    %v305 = vadd.f32 0.0, %v304
    %v306 = vpop.f32.mrf.mxu0
    %v307 = vadd.f32 0.0, %v306
    %308 = vmatprep.mubr.f32.mxu0 0.0
    %309 = vmatmul.mubr.f32.gmra.mxu0 %v198
    %v310 = vpop.f32.mrf.mxu0
    %v311 = vadd.f32 0.0, %v310
    %v312 = vpop.f32.mrf.mxu0
    %v313 = vadd.f32 0.0, %v312
    %314 = vmatprep.mubr.f32.mxu0 0.0
    %315 = vmatmul.mubr.f32.gmra.mxu0 %v199
    %v316 = vpop.f32.mrf.mxu0
    %v317 = vadd.f32 0.0, %v316
    %v318 = vpop.f32.mrf.mxu0
    %v319 = vadd.f32 0.0, %v318
    %320 = vmatprep.mubr.f32.mxu0 0.0
    %321 = vmatmul.mubr.f32.gmra.mxu0 %v200
    %v322 = vpop.f32.mrf.mxu0
    %v323 = vadd.f32 0.0, %v322
    %v324 = vpop.f32.mrf.mxu0
    %v325 = vadd.f32 0.0, %v324
    %326 = vmatprep.mubr.f32.mxu0 0.0
    %327 = vmatmul.mubr.f32.gmra.mxu0 %v201
    %v328 = vpop.f32.mrf.mxu0
    %v329 = vadd.f32 0.0, %v328
    %v330 = vpop.f32.mrf.mxu0
    %v331 = vadd.f32 0.0, %v330
    %332 = vmatprep.mubr.f32.mxu0 0.0
    %333 = vmatmul.mubr.f32.gmra.mxu0 %v202
    %v334 = vpop.f32.mrf.mxu0
    %v335 = vadd.f32 0.0, %v334
    %v336 = vpop.f32.mrf.mxu0
    %v337 = vadd.f32 0.0, %v336
    %338 = vmatprep.mubr.f32.mxu0 0.0
    %339 = vmatmul.mubr.f32.gmra.mxu0 %v203
    %v340 = vpop.f32.mrf.mxu0
    %v341 = vadd.f32 0.0, %v340
    %v342 = vpop.f32.mrf.mxu0
    %v343 = vadd.f32 0.0, %v342
    %344 = vmatprep.mubr.f32.mxu0 0.0
    %345 = vmatmul.mubr.f32.gmra.mxu0 %v204
    %v346 = vpop.f32.mrf.mxu0
    %v347 = vadd.f32 0.0, %v346
    %v348 = vpop.f32.mrf.mxu0
    %v349 = vadd.f32 0.0, %v348
    %350 = vmatprep.mubr.f32.mxu0 0.0
    %351 = vmatmul.mubr.f32.gmra.mxu0 %v205
    %v352 = vpop.f32.mrf.mxu0
    %v353 = vadd.f32 0.0, %v352
    %v354 = vpop.f32.mrf.mxu0
    %v355 = vadd.f32 0.0, %v354
    %356 = vmatprep.mubr.f32.mxu0 0.0
    %357 = vmatmul.mubr.f32.gmra.mxu0 %v206
    %v358 = vpop.f32.mrf.mxu0
    %v359 = vadd.f32 0.0, %v358
    %v360 = vpop.f32.mrf.mxu0
    %v361 = vadd.f32 0.0, %v360
    %362 = vmatprep.mubr.f32.mxu0 0.0
    %363 = vmatmul.mubr.f32.gmra.mxu0 %v207
    %v364 = vpop.f32.mrf.mxu0
    %v365 = vadd.f32 0.0, %v364
    %v366 = vpop.f32.mrf.mxu0
    %v367 = vadd.f32 0.0, %v366
    %368 = vdwg.mxu0
    %369 = vmatprep.subr.mxu0 0.0
    %370 = vmatpush1.msra.mxu0 %v174
    %371 = vmatprep.subr.mxu0 0.0
    %372 = vmatpush1.msra.mxu0 %v171
    %373 = vmatprep.subr.mxu0 0.0
    %374 = vmatpush1.msra.mxu0 %v168
    %375 = vmatprep.subr.mxu0 0.0
    %376 = vmatpush1.msra.mxu0 %v165
    %377 = vmatprep.subr.mxu0 0.0
    %378 = vmatpush1.msra.mxu0 %v162
    %379 = vmatprep.subr.mxu0 0.0
    %380 = vmatpush1.msra.mxu0 %v159
    %381 = vmatprep.subr.mxu0 0.0
    %382 = vmatpush1.msra.mxu0 %v156
    %383 = vmatprep.subr.mxu0 0.0
    %384 = vmatpush1.msra.mxu0 %v153
    %385 = vmatprep.subr.mxu0 0.0
    %386 = vmatpush1.msra.mxu0 %v150
    %387 = vmatprep.subr.mxu0 0.0
    %388 = vmatpush1.msra.mxu0 %v147
    %389 = vmatprep.subr.mxu0 0.0
    %390 = vmatpush1.msra.mxu0 %v144
    %391 = vmatprep.subr.mxu0 0.0
    %392 = vmatpush1.msra.mxu0 %v141
    %393 = vmatprep.subr.mxu0 0.0
    %394 = vmatpush1.msra.mxu0 %v138
    %395 = vmatprep.subr.mxu0 0.0
    %396 = vmatpush1.msra.mxu0 %v135
    %397 = vmatprep.subr.mxu0 0.0
    %398 = vmatpush1.msra.mxu0 %v132
    %399 = vmatprep.subr.mxu0 0.0
    %400 = vmatpush1.msra.mxu0 %v129
    %401 = vmatprep.subr.mxu0 0.0
    %402 = vmatpush2.msra.mxu0 0.0
    %403 = vmatprep.subr.mxu0 0.0
    %404 = vmatpush2.msra.mxu0 0.0
    %405 = vmatprep.subr.mxu0 0.0
    %406 = vmatpush2.msra.mxu0 0.0
    %407 = vmatprep.subr.mxu0 0.0
    %408 = vmatpush2.msra.mxu0 0.0
    %409 = vmatprep.subr.mxu0 0.0
    %410 = vmatpush2.msra.mxu0 0.0
    %411 = vmatprep.subr.mxu0 0.0
    %412 = vmatpush2.msra.mxu0 0.0
    %413 = vmatprep.subr.mxu0 0.0
    %414 = vmatpush2.msra.mxu0 0.0
    %415 = vmatprep.subr.mxu0 0.0
    %416 = vmatpush2.msra.mxu0 0.0
    %417 = vmatprep.subr.mxu0 0.0
    %418 = vmatpush2.msra.mxu0 0.0
    %419 = vmatprep.subr.mxu0 0.0
    %420 = vmatpush2.msra.mxu0 0.0
    %421 = vmatprep.subr.mxu0 0.0
    %422 = vmatpush2.msra.mxu0 0.0
    %423 = vmatprep.subr.mxu0 0.0
    %424 = vmatpush2.msra.mxu0 0.0
    %425 = vmatprep.subr.mxu0 0.0
    %426 = vmatpush2.msra.mxu0 0.0
    %427 = vmatprep.subr.mxu0 0.0
    %428 = vmatpush2.msra.mxu0 0.0
    %429 = vmatprep.subr.mxu0 0.0
    %430 = vmatpush2.msra.mxu0 0.0
    %431 = vmatprep.subr.mxu0 0.0
    %432 = vmatpush2.msra.mxu0 0.0
    %433 = vmatprep.mubr.f32.mxu0 0.0
    %434 = vmatmul.mubr.f32.gmra.mxu0 %v192
    %v435 = vpop.f32.mrf.mxu0
    %v436 = vadd.f32 0.0, %v435
    %v437 = vpop.f32.mrf.mxu0
    %438 = vmatprep.mubr.f32.mxu0 0.0
    %439 = vmatmul.mubr.f32.gmra.mxu0 %v193
    %v440 = vpop.f32.mrf.mxu0
    %v441 = vadd.f32 0.0, %v440
    %v442 = vpop.f32.mrf.mxu0
    %443 = vmatprep.mubr.f32.mxu0 0.0
    %444 = vmatmul.mubr.f32.gmra.mxu0 %v194
    %v445 = vpop.f32.mrf.mxu0
    %v446 = vadd.f32 0.0, %v445
    %v447 = vpop.f32.mrf.mxu0
    %448 = vmatprep.mubr.f32.mxu0 0.0
    %449 = vmatmul.mubr.f32.gmra.mxu0 %v195
    %v450 = vpop.f32.mrf.mxu0
    %v451 = vadd.f32 0.0, %v450
    %v452 = vpop.f32.mrf.mxu0
    %453 = vmatprep.mubr.f32.mxu0 0.0
    %454 = vmatmul.mubr.f32.gmra.mxu0 %v196
    %v455 = vpop.f32.mrf.mxu0
    %v456 = vadd.f32 0.0, %v455
    %v457 = vpop.f32.mrf.mxu0
    %458 = vmatprep.mubr.f32.mxu0 0.0
    %459 = vmatmul.mubr.f32.gmra.mxu0 %v197
    %v460 = vpop.f32.mrf.mxu0
    %v461 = vadd.f32 0.0, %v460
    %v462 = vpop.f32.mrf.mxu0
    %463 = vmatprep.mubr.f32.mxu0 0.0
    %464 = vmatmul.mubr.f32.gmra.mxu0 %v198
    %v465 = vpop.f32.mrf.mxu0
    %v466 = vadd.f32 0.0, %v465
    %v467 = vpop.f32.mrf.mxu0
    %468 = vmatprep.mubr.f32.mxu0 0.0
    %469 = vmatmul.mubr.f32.gmra.mxu0 %v199
    %v470 = vpop.f32.mrf.mxu0
    %v471 = vadd.f32 0.0, %v470
    %v472 = vpop.f32.mrf.mxu0
    %473 = vmatprep.mubr.f32.mxu0 0.0
    %474 = vmatmul.mubr.f32.gmra.mxu0 %v200
    %v475 = vpop.f32.mrf.mxu0
    %v476 = vadd.f32 0.0, %v475
    %v477 = vpop.f32.mrf.mxu0
    %478 = vmatprep.mubr.f32.mxu0 0.0
    %479 = vmatmul.mubr.f32.gmra.mxu0 %v201
    %v480 = vpop.f32.mrf.mxu0
    %v481 = vadd.f32 0.0, %v480
    %v482 = vpop.f32.mrf.mxu0
    %483 = vmatprep.mubr.f32.mxu0 0.0
    %484 = vmatmul.mubr.f32.gmra.mxu0 %v202
    %v485 = vpop.f32.mrf.mxu0
    %v486 = vadd.f32 0.0, %v485
    %v487 = vpop.f32.mrf.mxu0
    %488 = vmatprep.mubr.f32.mxu0 0.0
    %489 = vmatmul.mubr.f32.gmra.mxu0 %v203
    %v490 = vpop.f32.mrf.mxu0
    %v491 = vadd.f32 0.0, %v490
    %v492 = vpop.f32.mrf.mxu0
    %493 = vmatprep.mubr.f32.mxu0 0.0
    %494 = vmatmul.mubr.f32.gmra.mxu0 %v204
    %v495 = vpop.f32.mrf.mxu0
    %v496 = vadd.f32 0.0, %v495
    %v497 = vpop.f32.mrf.mxu0
    %498 = vmatprep.mubr.f32.mxu0 0.0
    %499 = vmatmul.mubr.f32.gmra.mxu0 %v205
    %v500 = vpop.f32.mrf.mxu0
    %v501 = vadd.f32 0.0, %v500
    %v502 = vpop.f32.mrf.mxu0
    %503 = vmatprep.mubr.f32.mxu0 0.0
    %504 = vmatmul.mubr.f32.gmra.mxu0 %v206
    %v505 = vpop.f32.mrf.mxu0
    %v506 = vadd.f32 0.0, %v505
    %v507 = vpop.f32.mrf.mxu0
    %508 = vmatprep.mubr.f32.mxu0 0.0
    %509 = vmatmul.mubr.f32.gmra.mxu0 %v207
    %v510 = vpop.f32.mrf.mxu0
    %v511 = vadd.f32 0.0, %v510
    %v512 = vpop.f32.mrf.mxu0
    %513 = vdwg.mxu0
    %514 = vmatprep.subr.mxu0 %v125
    %515 = vmatpush1.msra.mxu0 %v124
    %516 = vmatprep.subr.mxu0 %v122
    %517 = vmatpush1.msra.mxu0 %v121
    %518 = vmatprep.subr.mxu0 %v119
    %519 = vmatpush1.msra.mxu0 %v118
    %520 = vmatprep.subr.mxu0 %v116
    %521 = vmatpush1.msra.mxu0 %v115
    %522 = vmatprep.subr.mxu0 %v113
    %523 = vmatpush1.msra.mxu0 %v112
    %524 = vmatprep.subr.mxu0 %v110
    %525 = vmatpush1.msra.mxu0 %v109
    %526 = vmatprep.subr.mxu0 %v107
    %527 = vmatpush1.msra.mxu0 %v106
    %528 = vmatprep.subr.mxu0 %v104
    %529 = vmatpush1.msra.mxu0 %v103
    %530 = vmatprep.subr.mxu0 %v101
    %531 = vmatpush1.msra.mxu0 %v100
    %532 = vmatprep.subr.mxu0 %v98
    %533 = vmatpush1.msra.mxu0 %v97
    %534 = vmatprep.subr.mxu0 %v95
    %535 = vmatpush1.msra.mxu0 %v94
    %536 = vmatprep.subr.mxu0 %v92
    %537 = vmatpush1.msra.mxu0 %v91
    %538 = vmatprep.subr.mxu0 %v89
    %539 = vmatpush1.msra.mxu0 %v88
    %540 = vmatprep.subr.mxu0 %v86
    %541 = vmatpush1.msra.mxu0 %v85
    %542 = vmatprep.subr.mxu0 %v83
    %543 = vmatpush1.msra.mxu0 %v82
    %544 = vmatprep.subr.mxu0 %v80
    %545 = vmatpush1.msra.mxu0 %v79
    %546 = vmatprep.subr.mxu0 0.0
    %547 = vmatpush2.msra.mxu0 0.0
    %548 = vmatprep.subr.mxu0 0.0
    %549 = vmatpush2.msra.mxu0 0.0
    %550 = vmatprep.subr.mxu0 0.0
    %551 = vmatpush2.msra.mxu0 0.0
    %552 = vmatprep.subr.mxu0 0.0
    %553 = vmatpush2.msra.mxu0 0.0
    %554 = vmatprep.subr.mxu0 0.0
    %555 = vmatpush2.msra.mxu0 0.0
    %556 = vmatprep.subr.mxu0 0.0
    %557 = vmatpush2.msra.mxu0 0.0
    %558 = vmatprep.subr.mxu0 0.0
    %559 = vmatpush2.msra.mxu0 0.0
    %560 = vmatprep.subr.mxu0 0.0
    %561 = vmatpush2.msra.mxu0 0.0
    %562 = vmatprep.subr.mxu0 0.0
    %563 = vmatpush2.msra.mxu0 0.0
    %564 = vmatprep.subr.mxu0 0.0
    %565 = vmatpush2.msra.mxu0 0.0
    %566 = vmatprep.subr.mxu0 0.0
    %567 = vmatpush2.msra.mxu0 0.0
    %568 = vmatprep.subr.mxu0 0.0
    %569 = vmatpush2.msra.mxu0 0.0
    %570 = vmatprep.subr.mxu0 0.0
    %571 = vmatpush2.msra.mxu0 0.0
    %572 = vmatprep.subr.mxu0 0.0
    %573 = vmatpush2.msra.mxu0 0.0
    %574 = vmatprep.subr.mxu0 0.0
    %575 = vmatpush2.msra.mxu0 0.0
    %576 = vmatprep.subr.mxu0 0.0
    %577 = vmatpush2.msra.mxu0 0.0
    %578 = vmatprep.mubr.f32.mxu0 0.0
    %579 = vmatmul.mubr.f32.gmra.mxu0 %v176
    %v580 = vpop.f32.mrf.mxu0
    %v581 = vadd.f32 %v275, %v580
    %v582 = vpop.f32.mrf.mxu0
    %v583 = vadd.f32 %v277, %v582
    %584 = vmatprep.mubr.f32.mxu0 0.0
    %585 = vmatmul.mubr.f32.gmra.mxu0 %v177
    %v586 = vpop.f32.mrf.mxu0
    %v587 = vadd.f32 %v281, %v586
    %v588 = vpop.f32.mrf.mxu0
    %v589 = vadd.f32 %v283, %v588
    %590 = vmatprep.mubr.f32.mxu0 0.0
    %591 = vmatmul.mubr.f32.gmra.mxu0 %v178
    %v592 = vpop.f32.mrf.mxu0
    %v593 = vadd.f32 %v287, %v592
    %v594 = vpop.f32.mrf.mxu0
    %v595 = vadd.f32 %v289, %v594
    %596 = vmatprep.mubr.f32.mxu0 0.0
    %597 = vmatmul.mubr.f32.gmra.mxu0 %v179
    %v598 = vpop.f32.mrf.mxu0
    %v599 = vadd.f32 %v293, %v598
    %v600 = vpop.f32.mrf.mxu0
    %v601 = vadd.f32 %v295, %v600
    %602 = vmatprep.mubr.f32.mxu0 0.0
    %603 = vmatmul.mubr.f32.gmra.mxu0 %v180
    %v604 = vpop.f32.mrf.mxu0
    %v605 = vadd.f32 %v299, %v604
    %v606 = vpop.f32.mrf.mxu0
    %v607 = vadd.f32 %v301, %v606
    %608 = vmatprep.mubr.f32.mxu0 0.0
    %609 = vmatmul.mubr.f32.gmra.mxu0 %v181
    %v610 = vpop.f32.mrf.mxu0
    %v611 = vadd.f32 %v305, %v610
    %v612 = vpop.f32.mrf.mxu0
    %v613 = vadd.f32 %v307, %v612
    %614 = vmatprep.mubr.f32.mxu0 0.0
    %615 = vmatmul.mubr.f32.gmra.mxu0 %v182
    %v616 = vpop.f32.mrf.mxu0
    %v617 = vadd.f32 %v311, %v616
    %v618 = vpop.f32.mrf.mxu0
    %v619 = vadd.f32 %v313, %v618
    %620 = vmatprep.mubr.f32.mxu0 0.0
    %621 = vmatmul.mubr.f32.gmra.mxu0 %v183
    %v622 = vpop.f32.mrf.mxu0
    %v623 = vadd.f32 %v317, %v622
    %v624 = vpop.f32.mrf.mxu0
    %v625 = vadd.f32 %v319, %v624
    %626 = vmatprep.mubr.f32.mxu0 0.0
    %627 = vmatmul.mubr.f32.gmra.mxu0 %v184
    %v628 = vpop.f32.mrf.mxu0
    %v629 = vadd.f32 %v323, %v628
    %v630 = vpop.f32.mrf.mxu0
    %v631 = vadd.f32 %v325, %v630
    %632 = vmatprep.mubr.f32.mxu0 0.0
    %633 = vmatmul.mubr.f32.gmra.mxu0 %v185
    %v634 = vpop.f32.mrf.mxu0
    %v635 = vadd.f32 %v329, %v634
    %v636 = vpop.f32.mrf.mxu0
    %v637 = vadd.f32 %v331, %v636
    %638 = vmatprep.mubr.f32.mxu0 0.0
    %639 = vmatmul.mubr.f32.gmra.mxu0 %v186
    %v640 = vpop.f32.mrf.mxu0
    %v641 = vadd.f32 %v335, %v640
    %v642 = vpop.f32.mrf.mxu0
    %v643 = vadd.f32 %v337, %v642
    %644 = vmatprep.mubr.f32.mxu0 0.0
    %645 = vmatmul.mubr.f32.gmra.mxu0 %v187
    %v646 = vpop.f32.mrf.mxu0
    %v647 = vadd.f32 %v341, %v646
    %v648 = vpop.f32.mrf.mxu0
    %v649 = vadd.f32 %v343, %v648
    %650 = vmatprep.mubr.f32.mxu0 0.0
    %651 = vmatmul.mubr.f32.gmra.mxu0 %v188
    %v652 = vpop.f32.mrf.mxu0
    %v653 = vadd.f32 %v347, %v652
    %v654 = vpop.f32.mrf.mxu0
    %v655 = vadd.f32 %v349, %v654
    %656 = vmatprep.mubr.f32.mxu0 0.0
    %657 = vmatmul.mubr.f32.gmra.mxu0 %v189
    %v658 = vpop.f32.mrf.mxu0
    %v659 = vadd.f32 %v353, %v658
    %v660 = vpop.f32.mrf.mxu0
    %v661 = vadd.f32 %v355, %v660
    %662 = vmatprep.mubr.f32.mxu0 0.0
    %663 = vmatmul.mubr.f32.gmra.mxu0 %v190
    %v664 = vpop.f32.mrf.mxu0
    %v665 = vadd.f32 %v359, %v664
    %v666 = vpop.f32.mrf.mxu0
    %v667 = vadd.f32 %v361, %v666
    %668 = vmatprep.mubr.f32.mxu0 0.0
    %669 = vmatmul.mubr.f32.gmra.mxu0 %v191
    %v670 = vpop.f32.mrf.mxu0
    %v671 = vadd.f32 %v365, %v670
    %v672 = vpop.f32.mrf.mxu0
    %v673 = vadd.f32 %v367, %v672
    %674 = vdwg.mxu0
    %675 = vmatprep.subr.mxu0 0.0
    %676 = vmatpush1.msra.mxu0 %v126
    %677 = vmatprep.subr.mxu0 0.0
    %678 = vmatpush1.msra.mxu0 %v123
    %679 = vmatprep.subr.mxu0 0.0
    %680 = vmatpush1.msra.mxu0 %v120
    %681 = vmatprep.subr.mxu0 0.0
    %682 = vmatpush1.msra.mxu0 %v117
    %683 = vmatprep.subr.mxu0 0.0
    %684 = vmatpush1.msra.mxu0 %v114
    %685 = vmatprep.subr.mxu0 0.0
    %686 = vmatpush1.msra.mxu0 %v111
    %687 = vmatprep.subr.mxu0 0.0
    %688 = vmatpush1.msra.mxu0 %v108
    %689 = vmatprep.subr.mxu0 0.0
    %690 = vmatpush1.msra.mxu0 %v105
    %691 = vmatprep.subr.mxu0 0.0
    %692 = vmatpush1.msra.mxu0 %v102
    %693 = vmatprep.subr.mxu0 0.0
    %694 = vmatpush1.msra.mxu0 %v99
    %695 = vmatprep.subr.mxu0 0.0
    %696 = vmatpush1.msra.mxu0 %v96
    %697 = vmatprep.subr.mxu0 0.0
    %698 = vmatpush1.msra.mxu0 %v93
    %699 = vmatprep.subr.mxu0 0.0
    %700 = vmatpush1.msra.mxu0 %v90
    %701 = vmatprep.subr.mxu0 0.0
    %702 = vmatpush1.msra.mxu0 %v87
    %703 = vmatprep.subr.mxu0 0.0
    %704 = vmatpush1.msra.mxu0 %v84
    %705 = vmatprep.subr.mxu0 0.0
    %706 = vmatpush1.msra.mxu0 %v81
    %707 = vmatprep.subr.mxu0 0.0
    %708 = vmatpush2.msra.mxu0 0.0
    %709 = vmatprep.subr.mxu0 0.0
    %710 = vmatpush2.msra.mxu0 0.0
    %711 = vmatprep.subr.mxu0 0.0
    %712 = vmatpush2.msra.mxu0 0.0
    %713 = vmatprep.subr.mxu0 0.0
    %714 = vmatpush2.msra.mxu0 0.0
    %715 = vmatprep.subr.mxu0 0.0
    %716 = vmatpush2.msra.mxu0 0.0
    %717 = vmatprep.subr.mxu0 0.0
    %718 = vmatpush2.msra.mxu0 0.0
    %719 = vmatprep.subr.mxu0 0.0
    %720 = vmatpush2.msra.mxu0 0.0
    %721 = vmatprep.subr.mxu0 0.0
    %722 = vmatpush2.msra.mxu0 0.0
    %723 = vmatprep.subr.mxu0 0.0
    %724 = vmatpush2.msra.mxu0 0.0
    %725 = vmatprep.subr.mxu0 0.0
    %726 = vmatpush2.msra.mxu0 0.0
    %727 = vmatprep.subr.mxu0 0.0
    %728 = vmatpush2.msra.mxu0 0.0
    %729 = vmatprep.subr.mxu0 0.0
    %730 = vmatpush2.msra.mxu0 0.0
    %731 = vmatprep.subr.mxu0 0.0
    %732 = vmatpush2.msra.mxu0 0.0
    %733 = vmatprep.subr.mxu0 0.0
    %734 = vmatpush2.msra.mxu0 0.0
    %735 = vmatprep.subr.mxu0 0.0
    %736 = vmatpush2.msra.mxu0 0.0
    %737 = vmatprep.subr.mxu0 0.0
    %738 = vmatpush2.msra.mxu0 0.0
    %739 = vmatprep.mubr.f32.mxu0 0.0
    %740 = vmatmul.mubr.f32.gmra.mxu0 %v176
    %v741 = vpop.f32.mrf.mxu0
    %v742 = vadd.f32 %v436, %v741
    %v743 = vpop.f32.mrf.mxu0
    %744 = vmatprep.mubr.f32.mxu0 0.0
    %745 = vmatmul.mubr.f32.gmra.mxu0 %v177
    %v746 = vpop.f32.mrf.mxu0
    %v747 = vadd.f32 %v441, %v746
    %v748 = vpop.f32.mrf.mxu0
    %749 = vmatprep.mubr.f32.mxu0 0.0
    %750 = vmatmul.mubr.f32.gmra.mxu0 %v178
    %v751 = vpop.f32.mrf.mxu0
    %v752 = vadd.f32 %v446, %v751
    %v753 = vpop.f32.mrf.mxu0
    %754 = vmatprep.mubr.f32.mxu0 0.0
    %755 = vmatmul.mubr.f32.gmra.mxu0 %v179
    %v756 = vpop.f32.mrf.mxu0
    %v757 = vadd.f32 %v451, %v756
    %v758 = vpop.f32.mrf.mxu0
    %759 = vmatprep.mubr.f32.mxu0 0.0
    %760 = vmatmul.mubr.f32.gmra.mxu0 %v180
    %v761 = vpop.f32.mrf.mxu0
    %v762 = vadd.f32 %v456, %v761
    %v763 = vpop.f32.mrf.mxu0
    %764 = vmatprep.mubr.f32.mxu0 0.0
    %765 = vmatmul.mubr.f32.gmra.mxu0 %v181
    %v766 = vpop.f32.mrf.mxu0
    %v767 = vadd.f32 %v461, %v766
    %v768 = vpop.f32.mrf.mxu0
    %769 = vmatprep.mubr.f32.mxu0 0.0
    %770 = vmatmul.mubr.f32.gmra.mxu0 %v182
    %v771 = vpop.f32.mrf.mxu0
    %v772 = vadd.f32 %v466, %v771
    %v773 = vpop.f32.mrf.mxu0
    %774 = vmatprep.mubr.f32.mxu0 0.0
    %775 = vmatmul.mubr.f32.gmra.mxu0 %v183
    %v776 = vpop.f32.mrf.mxu0
    %v777 = vadd.f32 %v471, %v776
    %v778 = vpop.f32.mrf.mxu0
    %779 = vmatprep.mubr.f32.mxu0 0.0
    %780 = vmatmul.mubr.f32.gmra.mxu0 %v184
    %v781 = vpop.f32.mrf.mxu0
    %v782 = vadd.f32 %v476, %v781
    %v783 = vpop.f32.mrf.mxu0
    %784 = vmatprep.mubr.f32.mxu0 0.0
    %785 = vmatmul.mubr.f32.gmra.mxu0 %v185
    %v786 = vpop.f32.mrf.mxu0
    %v787 = vadd.f32 %v481, %v786
    %v788 = vpop.f32.mrf.mxu0
    %789 = vmatprep.mubr.f32.mxu0 0.0
    %790 = vmatmul.mubr.f32.gmra.mxu0 %v186
    %v791 = vpop.f32.mrf.mxu0
    %v792 = vadd.f32 %v486, %v791
    %v793 = vpop.f32.mrf.mxu0
    %794 = vmatprep.mubr.f32.mxu0 0.0
    %795 = vmatmul.mubr.f32.gmra.mxu0 %v187
    %v796 = vpop.f32.mrf.mxu0
    %v797 = vadd.f32 %v491, %v796
    %v798 = vpop.f32.mrf.mxu0
    %799 = vmatprep.mubr.f32.mxu0 0.0
    %800 = vmatmul.mubr.f32.gmra.mxu0 %v188
    %v801 = vpop.f32.mrf.mxu0
    %v802 = vadd.f32 %v496, %v801
    %v803 = vpop.f32.mrf.mxu0
    %804 = vmatprep.mubr.f32.mxu0 0.0
    %805 = vmatmul.mubr.f32.gmra.mxu0 %v189
    %v806 = vpop.f32.mrf.mxu0
    %v807 = vadd.f32 %v501, %v806
    %v808 = vpop.f32.mrf.mxu0
    %809 = vmatprep.mubr.f32.mxu0 0.0
    %810 = vmatmul.mubr.f32.gmra.mxu0 %v190
    %v811 = vpop.f32.mrf.mxu0
    %v812 = vadd.f32 %v506, %v811
    %v813 = vpop.f32.mrf.mxu0
    %814 = vmatprep.mubr.f32.mxu0 0.0
    %815 = vmatmul.mubr.f32.gmra.mxu0 %v191
    %v816 = vpop.f32.mrf.mxu0
    %v817 = vadd.f32 %v511, %v816
    %v818 = vpop.f32.mrf.mxu0
    %819 = vdwg.mxu0
    %v821 = vlaneseq
    %v822 = vshrl.u32 %v821, 7
    %v823 = vsub.s32 0, %v822
    %v824 = vrot.slane %v175, %v823
    %v825 = vlaneseq
    %v826 = vshrl.u32 %v825, 7
    %v827 = vsub.s32 1, %v826
    %v828 = vrot.slane %v175, %v827
    %v829 = vlaneseq
    %v830 = vshrl.u32 %v829, 7
    %v831 = vsub.s32 2, %v830
    %v832 = vrot.slane %v175, %v831
    %v836 = vadd.f32 %v581, %v824
    %v837 = vadd.f32 %v583, %v828
    %v838 = vadd.f32 %v742, %v832
    %v839 = vadd.f32 %v587, %v824
    %v840 = vadd.f32 %v589, %v828
    %v841 = vadd.f32 %v747, %v832
    %v842 = vadd.f32 %v593, %v824
    %v843 = vadd.f32 %v595, %v828
    %v844 = vadd.f32 %v752, %v832
    %v845 = vadd.f32 %v599, %v824
    %v846 = vadd.f32 %v601, %v828
    %v847 = vadd.f32 %v757, %v832
    %v848 = vadd.f32 %v605, %v824
    %v849 = vadd.f32 %v607, %v828
    %v850 = vadd.f32 %v762, %v832
    %v851 = vadd.f32 %v611, %v824
    %v852 = vadd.f32 %v613, %v828
    %v853 = vadd.f32 %v767, %v832
    %v854 = vadd.f32 %v617, %v824
    %v855 = vadd.f32 %v619, %v828
    %v856 = vadd.f32 %v772, %v832
    %v857 = vadd.f32 %v623, %v824
    %v858 = vadd.f32 %v625, %v828
    %v859 = vadd.f32 %v777, %v832
    %v860 = vadd.f32 %v629, %v824
    %v861 = vadd.f32 %v631, %v828
    %v862 = vadd.f32 %v782, %v832
    %v863 = vadd.f32 %v635, %v824
    %v864 = vadd.f32 %v637, %v828
    %v865 = vadd.f32 %v787, %v832
    %v866 = vadd.f32 %v641, %v824
    %v867 = vadd.f32 %v643, %v828
    %v868 = vadd.f32 %v792, %v832
    %v869 = vadd.f32 %v647, %v824
    %v870 = vadd.f32 %v649, %v828
    %v871 = vadd.f32 %v797, %v832
    %v872 = vadd.f32 %v653, %v824
    %v873 = vadd.f32 %v655, %v828
    %v874 = vadd.f32 %v802, %v832
    %v875 = vadd.f32 %v659, %v824
    %v876 = vadd.f32 %v661, %v828
    %v877 = vadd.f32 %v807, %v832
    %v878 = vadd.f32 %v665, %v824
    %v879 = vadd.f32 %v667, %v828
    %v880 = vadd.f32 %v812, %v832
    %v881 = vadd.f32 %v671, %v824
    %v882 = vadd.f32 %v673, %v828
    %v883 = vadd.f32 %v817, %v832
    %v884 = vxor.u32 %v836, 2147483648
    %v885 = vxor.u32 %v839, 2147483648
    %v886 = vxor.u32 %v842, 2147483648
    %v887 = vxor.u32 %v845, 2147483648
    %v888 = vxor.u32 %v848, 2147483648
    %v889 = vxor.u32 %v851, 2147483648
    %v890 = vxor.u32 %v854, 2147483648
    %v891 = vxor.u32 %v857, 2147483648
    %v892 = vxor.u32 %v860, 2147483648
    %v893 = vxor.u32 %v863, 2147483648
    %v894 = vxor.u32 %v866, 2147483648
    %v895 = vxor.u32 %v869, 2147483648
    %v896 = vxor.u32 %v872, 2147483648
    %v897 = vxor.u32 %v875, 2147483648
    %v898 = vxor.u32 %v878, 2147483648
    %v899 = vxor.u32 %v881, 2147483648
    %v900 = vmul.f32 %v884, 1.442695
    %v901 = vpow.pop %v900
    %v902 = vmul.f32 %v885, 1.442695
    %v903 = vpow.pop %v902
    %v904 = vmul.f32 %v886, 1.442695
    %v905 = vpow.pop %v904
    %v906 = vmul.f32 %v887, 1.442695
    %v907 = vpow.pop %v906
    %v908 = vmul.f32 %v888, 1.442695
    %v909 = vpow.pop %v908
    %v910 = vmul.f32 %v889, 1.442695
    %v911 = vpow.pop %v910
    %v912 = vmul.f32 %v890, 1.442695
    %v913 = vpow.pop %v912
    %v914 = vmul.f32 %v891, 1.442695
    %v915 = vpow.pop %v914
    %v916 = vmul.f32 %v892, 1.442695
    %v917 = vpow.pop %v916
    %v918 = vmul.f32 %v893, 1.442695
    %v919 = vpow.pop %v918
    %v920 = vmul.f32 %v894, 1.442695
    %v921 = vpow.pop %v920
    %v922 = vmul.f32 %v895, 1.442695
    %v923 = vpow.pop %v922
    %v924 = vmul.f32 %v896, 1.442695
    %v925 = vpow.pop %v924
    %v926 = vmul.f32 %v897, 1.442695
    %v927 = vpow.pop %v926
    %v928 = vmul.f32 %v898, 1.442695
    %v929 = vpow.pop %v928
    %v930 = vmul.f32 %v899, 1.442695
    %v931 = vpow.pop %v930
    %v932 = vadd.f32 %v901, 1.0
    %v933 = vadd.f32 %v903, 1.0
    %v934 = vadd.f32 %v905, 1.0
    %v935 = vadd.f32 %v907, 1.0
    %v936 = vadd.f32 %v909, 1.0
    %v937 = vadd.f32 %v911, 1.0
    %v938 = vadd.f32 %v913, 1.0
    %v939 = vadd.f32 %v915, 1.0
    %v940 = vadd.f32 %v917, 1.0
    %v941 = vadd.f32 %v919, 1.0
    %v942 = vadd.f32 %v921, 1.0
    %v943 = vadd.f32 %v923, 1.0
    %v944 = vadd.f32 %v925, 1.0
    %v945 = vadd.f32 %v927, 1.0
    %v946 = vadd.f32 %v929, 1.0
    %v947 = vadd.f32 %v931, 1.0
    %v948 = vrcp.pop %v932
    %v949 = vmul.f32 1.0, %v948
    %v950 = vrcp.pop %v933
    %v951 = vmul.f32 1.0, %v950
    %v952 = vrcp.pop %v934
    %v953 = vmul.f32 1.0, %v952
    %v954 = vrcp.pop %v935
    %v955 = vmul.f32 1.0, %v954
    %v956 = vrcp.pop %v936
    %v957 = vmul.f32 1.0, %v956
    %v958 = vrcp.pop %v937
    %v959 = vmul.f32 1.0, %v958
    %v960 = vrcp.pop %v938
    %v961 = vmul.f32 1.0, %v960
    %v962 = vrcp.pop %v939
    %v963 = vmul.f32 1.0, %v962
    %v964 = vrcp.pop %v940
    %v965 = vmul.f32 1.0, %v964
    %v966 = vrcp.pop %v941
    %v967 = vmul.f32 1.0, %v966
    %v968 = vrcp.pop %v942
    %v969 = vmul.f32 1.0, %v968
    %v970 = vrcp.pop %v943
    %v971 = vmul.f32 1.0, %v970
    %v972 = vrcp.pop %v944
    %v973 = vmul.f32 1.0, %v972
    %v974 = vrcp.pop %v945
    %v975 = vmul.f32 1.0, %v974
    %v976 = vrcp.pop %v946
    %v977 = vmul.f32 1.0, %v976
    %v978 = vrcp.pop %v947
    %v979 = vmul.f32 1.0, %v978
    %v980 = vtanh.pop %v837
    %v981 = vtanh.pop %v840
    %v982 = vtanh.pop %v843
    %v983 = vtanh.pop %v846
    %v984 = vtanh.pop %v849
    %v985 = vtanh.pop %v852
    %v986 = vtanh.pop %v855
    %v987 = vtanh.pop %v858
    %v988 = vtanh.pop %v861
    %v989 = vtanh.pop %v864
    %v990 = vtanh.pop %v867
    %v991 = vtanh.pop %v870
    %v992 = vtanh.pop %v873
    %v993 = vtanh.pop %v876
    %v994 = vtanh.pop %v879
    %v995 = vtanh.pop %v882
    %v996 = vxor.u32 %v838, 2147483648
    %v997 = vxor.u32 %v841, 2147483648
    %v998 = vxor.u32 %v844, 2147483648
    %v999 = vxor.u32 %v847, 2147483648
    %v1000 = vxor.u32 %v850, 2147483648
    %v1001 = vxor.u32 %v853, 2147483648
    %v1002 = vxor.u32 %v856, 2147483648
    %v1003 = vxor.u32 %v859, 2147483648
    %v1004 = vxor.u32 %v862, 2147483648
    %v1005 = vxor.u32 %v865, 2147483648
    %v1006 = vxor.u32 %v868, 2147483648
    %v1007 = vxor.u32 %v871, 2147483648
    %v1008 = vxor.u32 %v874, 2147483648
    %v1009 = vxor.u32 %v877, 2147483648
    %v1010 = vxor.u32 %v880, 2147483648
    %v1011 = vxor.u32 %v883, 2147483648
    %v1012 = vmul.f32 %v996, 1.442695
    %v1013 = vpow.pop %v1012
    %v1014 = vmul.f32 %v997, 1.442695
    %v1015 = vpow.pop %v1014
    %v1016 = vmul.f32 %v998, 1.442695
    %v1017 = vpow.pop %v1016
    %v1018 = vmul.f32 %v999, 1.442695
    %v1019 = vpow.pop %v1018
    %v1020 = vmul.f32 %v1000, 1.442695
    %v1021 = vpow.pop %v1020
    %v1022 = vmul.f32 %v1001, 1.442695
    %v1023 = vpow.pop %v1022
    %v1024 = vmul.f32 %v1002, 1.442695
    %v1025 = vpow.pop %v1024
    %v1026 = vmul.f32 %v1003, 1.442695
    %v1027 = vpow.pop %v1026
    %v1028 = vmul.f32 %v1004, 1.442695
    %v1029 = vpow.pop %v1028
    %v1030 = vmul.f32 %v1005, 1.442695
    %v1031 = vpow.pop %v1030
    %v1032 = vmul.f32 %v1006, 1.442695
    %v1033 = vpow.pop %v1032
    %v1034 = vmul.f32 %v1007, 1.442695
    %v1035 = vpow.pop %v1034
    %v1036 = vmul.f32 %v1008, 1.442695
    %v1037 = vpow.pop %v1036
    %v1038 = vmul.f32 %v1009, 1.442695
    %v1039 = vpow.pop %v1038
    %v1040 = vmul.f32 %v1010, 1.442695
    %v1041 = vpow.pop %v1040
    %v1042 = vmul.f32 %v1011, 1.442695
    %v1043 = vpow.pop %v1042
    %v1044 = vadd.f32 %v1013, 1.0
    %v1045 = vadd.f32 %v1015, 1.0
    %v1046 = vadd.f32 %v1017, 1.0
    %v1047 = vadd.f32 %v1019, 1.0
    %v1048 = vadd.f32 %v1021, 1.0
    %v1049 = vadd.f32 %v1023, 1.0
    %v1050 = vadd.f32 %v1025, 1.0
    %v1051 = vadd.f32 %v1027, 1.0
    %v1052 = vadd.f32 %v1029, 1.0
    %v1053 = vadd.f32 %v1031, 1.0
    %v1054 = vadd.f32 %v1033, 1.0
    %v1055 = vadd.f32 %v1035, 1.0
    %v1056 = vadd.f32 %v1037, 1.0
    %v1057 = vadd.f32 %v1039, 1.0
    %v1058 = vadd.f32 %v1041, 1.0
    %v1059 = vadd.f32 %v1043, 1.0
    %v1060 = vrcp.pop %v1044
    %v1061 = vmul.f32 1.0, %v1060
    %v1062 = vrcp.pop %v1045
    %v1063 = vmul.f32 1.0, %v1062
    %v1064 = vrcp.pop %v1046
    %v1065 = vmul.f32 1.0, %v1064
    %v1066 = vrcp.pop %v1047
    %v1067 = vmul.f32 1.0, %v1066
    %v1068 = vrcp.pop %v1048
    %v1069 = vmul.f32 1.0, %v1068
    %v1070 = vrcp.pop %v1049
    %v1071 = vmul.f32 1.0, %v1070
    %v1072 = vrcp.pop %v1050
    %v1073 = vmul.f32 1.0, %v1072
    %v1074 = vrcp.pop %v1051
    %v1075 = vmul.f32 1.0, %v1074
    %v1076 = vrcp.pop %v1052
    %v1077 = vmul.f32 1.0, %v1076
    %v1078 = vrcp.pop %v1053
    %v1079 = vmul.f32 1.0, %v1078
    %v1080 = vrcp.pop %v1054
    %v1081 = vmul.f32 1.0, %v1080
    %v1082 = vrcp.pop %v1055
    %v1083 = vmul.f32 1.0, %v1082
    %v1084 = vrcp.pop %v1056
    %v1085 = vmul.f32 1.0, %v1084
    %v1086 = vrcp.pop %v1057
    %v1087 = vmul.f32 1.0, %v1086
    %v1088 = vrcp.pop %v1058
    %v1089 = vmul.f32 1.0, %v1088
    %v1090 = vrcp.pop %v1059
    %v1091 = vmul.f32 1.0, %v1090
    %1092 = vst [vmem:[#allocation2] sm:$0xff] %v1061
    %1093 = vst [vmem:[#allocation2 + $0x8] sm:$0xff] %v1063
    %1094 = vst [vmem:[#allocation2 + $0x10] sm:$0xff] %v1065
    %1095 = vst [vmem:[#allocation2 + $0x18] sm:$0xff] %v1067
    %1096 = vst [vmem:[#allocation2 + $0x20] sm:$0xff] %v1069
    %1097 = vst [vmem:[#allocation2 + $0x28] sm:$0xff] %v1071
    %1098 = vst [vmem:[#allocation2 + $0x30] sm:$0xff] %v1073
    %1099 = vst [vmem:[#allocation2 + $0x38] sm:$0xff] %v1075
    %1100 = vst [vmem:[#allocation2 + $0x40] sm:$0xff] %v1077
    %1101 = vst [vmem:[#allocation2 + $0x48] sm:$0xff] %v1079
    %1102 = vst [vmem:[#allocation2 + $0x50] sm:$0xff] %v1081
    %1103 = vst [vmem:[#allocation2 + $0x58] sm:$0xff] %v1083
    %1104 = vst [vmem:[#allocation2 + $0x60] sm:$0xff] %v1085
    %1105 = vst [vmem:[#allocation2 + $0x68] sm:$0xff] %v1087
    %1106 = vst [vmem:[#allocation2 + $0x70] sm:$0xff] %v1089
    %1107 = vst [vmem:[#allocation2 + $0x78] sm:$0xff] %v1091
    %v1108 = vsub.f32 1.0, %v1061
    %v1109 = vsub.f32 1.0, %v1063
    %v1110 = vsub.f32 1.0, %v1065
    %v1111 = vsub.f32 1.0, %v1067
    %v1112 = vsub.f32 1.0, %v1069
    %v1113 = vsub.f32 1.0, %v1071
    %v1114 = vsub.f32 1.0, %v1073
    %v1115 = vsub.f32 1.0, %v1075
    %v1116 = vsub.f32 1.0, %v1077
    %v1117 = vsub.f32 1.0, %v1079
    %v1118 = vsub.f32 1.0, %v1081
    %v1119 = vsub.f32 1.0, %v1083
    %v1120 = vsub.f32 1.0, %v1085
    %v1121 = vsub.f32 1.0, %v1087
    %v1122 = vsub.f32 1.0, %v1089
    %v1123 = vsub.f32 1.0, %v1091
    %v1124 = vmul.f32 %v1108, %v949
    %v1125 = vmul.f32 %v1109, %v951
    %v1126 = vmul.f32 %v1110, %v953
    %v1127 = vmul.f32 %v1111, %v955
    %v1128 = vmul.f32 %v1112, %v957
    %v1129 = vmul.f32 %v1113, %v959
    %v1130 = vmul.f32 %v1114, %v961
    %v1131 = vmul.f32 %v1115, %v963
    %v1132 = vmul.f32 %v1116, %v965
    %v1133 = vmul.f32 %v1117, %v967
    %v1134 = vmul.f32 %v1118, %v969
    %v1135 = vmul.f32 %v1119, %v971
    %v1136 = vmul.f32 %v1120, %v973
    %v1137 = vmul.f32 %v1121, %v975
    %v1138 = vmul.f32 %v1122, %v977
    %v1139 = vmul.f32 %v1123, %v979
    %v1140 = vmul.f32 %v1124, %v980
    %v1141 = vmul.f32 %v1125, %v981
    %v1142 = vmul.f32 %v1126, %v982
    %v1143 = vmul.f32 %v1127, %v983
    %v1144 = vmul.f32 %v1128, %v984
    %v1145 = vmul.f32 %v1129, %v985
    %v1146 = vmul.f32 %v1130, %v986
    %v1147 = vmul.f32 %v1131, %v987
    %v1148 = vmul.f32 %v1132, %v988
    %v1149 = vmul.f32 %v1133, %v989
    %v1150 = vmul.f32 %v1134, %v990
    %v1151 = vmul.f32 %v1135, %v991
    %v1152 = vmul.f32 %v1136, %v992
    %v1153 = vmul.f32 %v1137, %v993
    %v1154 = vmul.f32 %v1138, %v994
    %v1155 = vmul.f32 %v1139, %v995
    %1156 = vst [vmem:[#allocation3] sm:$0xff] %v1140
    %1157 = vst [vmem:[#allocation3 + $0x8] sm:$0xff] %v1141
    %1158 = vst [vmem:[#allocation3 + $0x10] sm:$0xff] %v1142
    %1159 = vst [vmem:[#allocation3 + $0x18] sm:$0xff] %v1143
    %1160 = vst [vmem:[#allocation3 + $0x20] sm:$0xff] %v1144
    %1161 = vst [vmem:[#allocation3 + $0x28] sm:$0xff] %v1145
    %1162 = vst [vmem:[#allocation3 + $0x30] sm:$0xff] %v1146
    %1163 = vst [vmem:[#allocation3 + $0x38] sm:$0xff] %v1147
    %1164 = vst [vmem:[#allocation3 + $0x40] sm:$0xff] %v1148
    %1165 = vst [vmem:[#allocation3 + $0x48] sm:$0xff] %v1149
    %1166 = vst [vmem:[#allocation3 + $0x50] sm:$0xff] %v1150
    %1167 = vst [vmem:[#allocation3 + $0x58] sm:$0xff] %v1151
    %1168 = vst [vmem:[#allocation3 + $0x60] sm:$0xff] %v1152
    %1169 = vst [vmem:[#allocation3 + $0x68] sm:$0xff] %v1153
    %1170 = vst [vmem:[#allocation3 + $0x70] sm:$0xff] %v1154
    %1171 = vst [vmem:[#allocation3 + $0x78] sm:$0xff] %v1155
    %v1172 = vld [vmem:[%s5] sm:$0x1]
    %1173 = vst [vmem:[#allocation12] sm:$0x1] %v1172
    %1174 = vst [vmem:[#allocation12 + $0x10] sm:$0x1] %v1172
    %1175 = vst [vmem:[#allocation12 + $0x20] sm:$0x1] %v1172
    %1176 = vst [vmem:[#allocation12 + $0x30] sm:$0x1] %v1172
    %1177 = vst [vmem:[#allocation12 + $0x40] sm:$0x1] %v1172
    %1178 = vst [vmem:[#allocation12 + $0x50] sm:$0x1] %v1172
    %1179 = vst [vmem:[#allocation12 + $0x60] sm:$0x1] %v1172
    %1180 = vst [vmem:[#allocation12 + $0x70] sm:$0x1] %v1172
    %v1181 = vld [vmem:[#allocation2] sm:$0x1]
    %v1182 = vld [vmem:[#allocation2 + $0x10] sm:$0x1]
    %v1183 = vld [vmem:[#allocation2 + $0x20] sm:$0x1]
    %v1184 = vld [vmem:[#allocation2 + $0x30] sm:$0x1]
    %v1185 = vld [vmem:[#allocation2 + $0x40] sm:$0x1]
    %v1186 = vld [vmem:[#allocation2 + $0x50] sm:$0x1]
    %v1187 = vld [vmem:[#allocation2 + $0x60] sm:$0x1]
    %v1188 = vld [vmem:[#allocation2 + $0x70] sm:$0x1]
    %v1189 = vld [vmem:[#allocation3] sm:$0x1]
    %v1190 = vld [vmem:[#allocation3 + $0x10] sm:$0x1]
    %v1191 = vld [vmem:[#allocation3 + $0x20] sm:$0x1]
    %v1192 = vld [vmem:[#allocation3 + $0x30] sm:$0x1]
    %v1193 = vld [vmem:[#allocation3 + $0x40] sm:$0x1]
    %v1194 = vld [vmem:[#allocation3 + $0x50] sm:$0x1]
    %v1195 = vld [vmem:[#allocation3 + $0x60] sm:$0x1]
    %v1196 = vld [vmem:[#allocation3 + $0x70] sm:$0x1]
    %v1197 = vmul.f32 %v1181, %v1172
    %v1198 = vmul.f32 %v1182, %v1172
    %v1199 = vmul.f32 %v1183, %v1172
    %v1200 = vmul.f32 %v1184, %v1172
    %v1201 = vmul.f32 %v1185, %v1172
    %v1202 = vmul.f32 %v1186, %v1172
    %v1203 = vmul.f32 %v1187, %v1172
    %v1204 = vmul.f32 %v1188, %v1172
    %v1205 = vadd.f32 %v1197, %v1189
    %v1206 = vadd.f32 %v1198, %v1190
    %v1207 = vadd.f32 %v1199, %v1191
    %v1208 = vadd.f32 %v1200, %v1192
    %v1209 = vadd.f32 %v1201, %v1193
    %v1210 = vadd.f32 %v1202, %v1194
    %v1211 = vadd.f32 %v1203, %v1195
    %v1212 = vadd.f32 %v1204, %v1196
    %1213 = vst [vmem:[#allocation12 + $0x1] sm:$0x1] %v1205
    %1214 = vst [vmem:[#allocation12 + $0x11] sm:$0x1] %v1206
    %1215 = vst [vmem:[#allocation12 + $0x21] sm:$0x1] %v1207
    %1216 = vst [vmem:[#allocation12 + $0x31] sm:$0x1] %v1208
    %1217 = vst [vmem:[#allocation12 + $0x41] sm:$0x1] %v1209
    %1218 = vst [vmem:[#allocation12 + $0x51] sm:$0x1] %v1210
    %1219 = vst [vmem:[#allocation12 + $0x61] sm:$0x1] %v1211
    %1220 = vst [vmem:[#allocation12 + $0x71] sm:$0x1] %v1212
    %v1221 = vld [vmem:[#allocation2 + $0x1] sm:$0x1]
    %v1222 = vld [vmem:[#allocation2 + $0x11] sm:$0x1]
    %v1223 = vld [vmem:[#allocation2 + $0x21] sm:$0x1]
    %v1224 = vld [vmem:[#allocation2 + $0x31] sm:$0x1]
    %v1225 = vld [vmem:[#allocation2 + $0x41] sm:$0x1]
    %v1226 = vld [vmem:[#allocation2 + $0x51] sm:$0x1]
    %v1227 = vld [vmem:[#allocation2 + $0x61] sm:$0x1]
    %v1228 = vld [vmem:[#allocation2 + $0x71] sm:$0x1]
    %v1229 = vld [vmem:[#allocation3 + $0x1] sm:$0x1]
    %v1230 = vld [vmem:[#allocation3 + $0x11] sm:$0x1]
    %v1231 = vld [vmem:[#allocation3 + $0x21] sm:$0x1]
    %v1232 = vld [vmem:[#allocation3 + $0x31] sm:$0x1]
    %v1233 = vld [vmem:[#allocation3 + $0x41] sm:$0x1]
    %v1234 = vld [vmem:[#allocation3 + $0x51] sm:$0x1]
    %v1235 = vld [vmem:[#allocation3 + $0x61] sm:$0x1]
    %v1236 = vld [vmem:[#allocation3 + $0x71] sm:$0x1]
    %v1237 = vmul.f32 %v1221, %v1205
    %v1238 = vmul.f32 %v1222, %v1206
    %v1239 = vmul.f32 %v1223, %v1207
    %v1240 = vmul.f32 %v1224, %v1208
    %v1241 = vmul.f32 %v1225, %v1209
    %v1242 = vmul.f32 %v1226, %v1210
    %v1243 = vmul.f32 %v1227, %v1211
    %v1244 = vmul.f32 %v1228, %v1212
    %v1245 = vadd.f32 %v1237, %v1229
    %v1246 = vadd.f32 %v1238, %v1230
    %v1247 = vadd.f32 %v1239, %v1231
    %v1248 = vadd.f32 %v1240, %v1232
    %v1249 = vadd.f32 %v1241, %v1233
    %v1250 = vadd.f32 %v1242, %v1234
    %v1251 = vadd.f32 %v1243, %v1235
    %v1252 = vadd.f32 %v1244, %v1236
    %1253 = vst [vmem:[#allocation12 + $0x2] sm:$0x1] %v1245
    %1254 = vst [vmem:[#allocation12 + $0x12] sm:$0x1] %v1246
    %1255 = vst [vmem:[#allocation12 + $0x22] sm:$0x1] %v1247
    %1256 = vst [vmem:[#allocation12 + $0x32] sm:$0x1] %v1248
    %1257 = vst [vmem:[#allocation12 + $0x42] sm:$0x1] %v1249
    %1258 = vst [vmem:[#allocation12 + $0x52] sm:$0x1] %v1250
    %1259 = vst [vmem:[#allocation12 + $0x62] sm:$0x1] %v1251
    %1260 = vst [vmem:[#allocation12 + $0x72] sm:$0x1] %v1252
    %v1261 = vld [vmem:[#allocation2 + $0x2] sm:$0x1]
    %v1262 = vld [vmem:[#allocation2 + $0x12] sm:$0x1]
    %v1263 = vld [vmem:[#allocation2 + $0x22] sm:$0x1]
    %v1264 = vld [vmem:[#allocation2 + $0x32] sm:$0x1]
    %v1265 = vld [vmem:[#allocation2 + $0x42] sm:$0x1]
    %v1266 = vld [vmem:[#allocation2 + $0x52] sm:$0x1]
    %v1267 = vld [vmem:[#allocation2 + $0x62] sm:$0x1]
    %v1268 = vld [vmem:[#allocation2 + $0x72] sm:$0x1]
    %v1269 = vld [vmem:[#allocation3 + $0x2] sm:$0x1]
    %v1270 = vld [vmem:[#allocation3 + $0x12] sm:$0x1]
    %v1271 = vld [vmem:[#allocation3 + $0x22] sm:$0x1]
    %v1272 = vld [vmem:[#allocation3 + $0x32] sm:$0x1]
    %v1273 = vld [vmem:[#allocation3 + $0x42] sm:$0x1]
    %v1274 = vld [vmem:[#allocation3 + $0x52] sm:$0x1]
    %v1275 = vld [vmem:[#allocation3 + $0x62] sm:$0x1]
    %v1276 = vld [vmem:[#allocation3 + $0x72] sm:$0x1]
    %v1277 = vmul.f32 %v1261, %v1245
    %v1278 = vmul.f32 %v1262, %v1246
    %v1279 = vmul.f32 %v1263, %v1247
    %v1280 = vmul.f32 %v1264, %v1248
    %v1281 = vmul.f32 %v1265, %v1249
    %v1282 = vmul.f32 %v1266, %v1250
    %v1283 = vmul.f32 %v1267, %v1251
    %v1284 = vmul.f32 %v1268, %v1252
    %v1285 = vadd.f32 %v1277, %v1269
    %v1286 = vadd.f32 %v1278, %v1270
    %v1287 = vadd.f32 %v1279, %v1271
    %v1288 = vadd.f32 %v1280, %v1272
    %v1289 = vadd.f32 %v1281, %v1273
    %v1290 = vadd.f32 %v1282, %v1274
    %v1291 = vadd.f32 %v1283, %v1275
    %v1292 = vadd.f32 %v1284, %v1276
    %1293 = vst [vmem:[#allocation12 + $0x3] sm:$0x1] %v1285
    %1294 = vst [vmem:[#allocation12 + $0x13] sm:$0x1] %v1286
    %1295 = vst [vmem:[#allocation12 + $0x23] sm:$0x1] %v1287
    %1296 = vst [vmem:[#allocation12 + $0x33] sm:$0x1] %v1288
    %1297 = vst [vmem:[#allocation12 + $0x43] sm:$0x1] %v1289
    %1298 = vst [vmem:[#allocation12 + $0x53] sm:$0x1] %v1290
    %1299 = vst [vmem:[#allocation12 + $0x63] sm:$0x1] %v1291
    %1300 = vst [vmem:[#allocation12 + $0x73] sm:$0x1] %v1292
    %v1301 = vld [vmem:[#allocation2 + $0x3] sm:$0x1]
    %v1302 = vld [vmem:[#allocation2 + $0x13] sm:$0x1]
    %v1303 = vld [vmem:[#allocation2 + $0x23] sm:$0x1]
    %v1304 = vld [vmem:[#allocation2 + $0x33] sm:$0x1]
    %v1305 = vld [vmem:[#allocation2 + $0x43] sm:$0x1]
    %v1306 = vld [vmem:[#allocation2 + $0x53] sm:$0x1]
    %v1307 = vld [vmem:[#allocation2 + $0x63] sm:$0x1]
    %v1308 = vld [vmem:[#allocation2 + $0x73] sm:$0x1]
    %v1309 = vld [vmem:[#allocation3 + $0x3] sm:$0x1]
    %v1310 = vld [vmem:[#allocation3 + $0x13] sm:$0x1]
    %v1311 = vld [vmem:[#allocation3 + $0x23] sm:$0x1]
    %v1312 = vld [vmem:[#allocation3 + $0x33] sm:$0x1]
    %v1313 = vld [vmem:[#allocation3 + $0x43] sm:$0x1]
    %v1314 = vld [vmem:[#allocation3 + $0x53] sm:$0x1]
    %v1315 = vld [vmem:[#allocation3 + $0x63] sm:$0x1]
    %v1316 = vld [vmem:[#allocation3 + $0x73] sm:$0x1]
    %v1317 = vmul.f32 %v1301, %v1285
    %v1318 = vmul.f32 %v1302, %v1286
    %v1319 = vmul.f32 %v1303, %v1287
    %v1320 = vmul.f32 %v1304, %v1288
    %v1321 = vmul.f32 %v1305, %v1289
    %v1322 = vmul.f32 %v1306, %v1290
    %v1323 = vmul.f32 %v1307, %v1291
    %v1324 = vmul.f32 %v1308, %v1292
    %v1325 = vadd.f32 %v1317, %v1309
    %v1326 = vadd.f32 %v1318, %v1310
    %v1327 = vadd.f32 %v1319, %v1311
    %v1328 = vadd.f32 %v1320, %v1312
    %v1329 = vadd.f32 %v1321, %v1313
    %v1330 = vadd.f32 %v1322, %v1314
    %v1331 = vadd.f32 %v1323, %v1315
    %v1332 = vadd.f32 %v1324, %v1316
    %1333 = vst [vmem:[#allocation12 + $0x4] sm:$0x1] %v1325
    %1334 = vst [vmem:[#allocation12 + $0x14] sm:$0x1] %v1326
    %1335 = vst [vmem:[#allocation12 + $0x24] sm:$0x1] %v1327
    %1336 = vst [vmem:[#allocation12 + $0x34] sm:$0x1] %v1328
    %1337 = vst [vmem:[#allocation12 + $0x44] sm:$0x1] %v1329
    %1338 = vst [vmem:[#allocation12 + $0x54] sm:$0x1] %v1330
    %1339 = vst [vmem:[#allocation12 + $0x64] sm:$0x1] %v1331
    %1340 = vst [vmem:[#allocation12 + $0x74] sm:$0x1] %v1332
    %v1341 = vld [vmem:[#allocation2 + $0x4] sm:$0x1]
    %v1342 = vld [vmem:[#allocation2 + $0x14] sm:$0x1]
    %v1343 = vld [vmem:[#allocation2 + $0x24] sm:$0x1]
    %v1344 = vld [vmem:[#allocation2 + $0x34] sm:$0x1]
    %v1345 = vld [vmem:[#allocation2 + $0x44] sm:$0x1]
    %v1346 = vld [vmem:[#allocation2 + $0x54] sm:$0x1]
    %v1347 = vld [vmem:[#allocation2 + $0x64] sm:$0x1]
    %v1348 = vld [vmem:[#allocation2 + $0x74] sm:$0x1]
    %v1349 = vld [vmem:[#allocation3 + $0x4] sm:$0x1]
    %v1350 = vld [vmem:[#allocation3 + $0x14] sm:$0x1]
    %v1351 = vld [vmem:[#allocation3 + $0x24] sm:$0x1]
    %v1352 = vld [vmem:[#allocation3 + $0x34] sm:$0x1]
    %v1353 = vld [vmem:[#allocation3 + $0x44] sm:$0x1]
    %v1354 = vld [vmem:[#allocation3 + $0x54] sm:$0x1]
    %v1355 = vld [vmem:[#allocation3 + $0x64] sm:$0x1]
    %v1356 = vld [vmem:[#allocation3 + $0x74] sm:$0x1]
    %v1357 = vmul.f32 %v1341, %v1325
    %v1358 = vmul.f32 %v1342, %v1326
    %v1359 = vmul.f32 %v1343, %v1327
    %v1360 = vmul.f32 %v1344, %v1328
    %v1361 = vmul.f32 %v1345, %v1329
    %v1362 = vmul.f32 %v1346, %v1330
    %v1363 = vmul.f32 %v1347, %v1331
    %v1364 = vmul.f32 %v1348, %v1332
    %v1365 = vadd.f32 %v1357, %v1349
    %v1366 = vadd.f32 %v1358, %v1350
    %v1367 = vadd.f32 %v1359, %v1351
    %v1368 = vadd.f32 %v1360, %v1352
    %v1369 = vadd.f32 %v1361, %v1353
    %v1370 = vadd.f32 %v1362, %v1354
    %v1371 = vadd.f32 %v1363, %v1355
    %v1372 = vadd.f32 %v1364, %v1356
    %1373 = vst [vmem:[#allocation12 + $0x5] sm:$0x1] %v1365
    %1374 = vst [vmem:[#allocation12 + $0x15] sm:$0x1] %v1366
    %1375 = vst [vmem:[#allocation12 + $0x25] sm:$0x1] %v1367
    %1376 = vst [vmem:[#allocation12 + $0x35] sm:$0x1] %v1368
    %1377 = vst [vmem:[#allocation12 + $0x45] sm:$0x1] %v1369
    %1378 = vst [vmem:[#allocation12 + $0x55] sm:$0x1] %v1370
    %1379 = vst [vmem:[#allocation12 + $0x65] sm:$0x1] %v1371
    %1380 = vst [vmem:[#allocation12 + $0x75] sm:$0x1] %v1372
    %v1381 = vld [vmem:[#allocation2 + $0x5] sm:$0x1]
    %v1382 = vld [vmem:[#allocation2 + $0x15] sm:$0x1]
    %v1383 = vld [vmem:[#allocation2 + $0x25] sm:$0x1]
    %v1384 = vld [vmem:[#allocation2 + $0x35] sm:$0x1]
    %v1385 = vld [vmem:[#allocation2 + $0x45] sm:$0x1]
    %v1386 = vld [vmem:[#allocation2 + $0x55] sm:$0x1]
    %v1387 = vld [vmem:[#allocation2 + $0x65] sm:$0x1]
    %v1388 = vld [vmem:[#allocation2 + $0x75] sm:$0x1]
    %v1389 = vld [vmem:[#allocation3 + $0x5] sm:$0x1]
    %v1390 = vld [vmem:[#allocation3 + $0x15] sm:$0x1]
    %v1391 = vld [vmem:[#allocation3 + $0x25] sm:$0x1]
    %v1392 = vld [vmem:[#allocation3 + $0x35] sm:$0x1]
    %v1393 = vld [vmem:[#allocation3 + $0x45] sm:$0x1]
    %v1394 = vld [vmem:[#allocation3 + $0x55] sm:$0x1]
    %v1395 = vld [vmem:[#allocation3 + $0x65] sm:$0x1]
    %v1396 = vld [vmem:[#allocation3 + $0x75] sm:$0x1]
    %v1397 = vmul.f32 %v1381, %v1365
    %v1398 = vmul.f32 %v1382, %v1366
    %v1399 = vmul.f32 %v1383, %v1367
    %v1400 = vmul.f32 %v1384, %v1368
    %v1401 = vmul.f32 %v1385, %v1369
    %v1402 = vmul.f32 %v1386, %v1370
    %v1403 = vmul.f32 %v1387, %v1371
    %v1404 = vmul.f32 %v1388, %v1372
    %v1405 = vadd.f32 %v1397, %v1389
    %v1406 = vadd.f32 %v1398, %v1390
    %v1407 = vadd.f32 %v1399, %v1391
    %v1408 = vadd.f32 %v1400, %v1392
    %v1409 = vadd.f32 %v1401, %v1393
    %v1410 = vadd.f32 %v1402, %v1394
    %v1411 = vadd.f32 %v1403, %v1395
    %v1412 = vadd.f32 %v1404, %v1396
    %1413 = vst [vmem:[#allocation12 + $0x6] sm:$0x1] %v1405
    %1414 = vst [vmem:[#allocation12 + $0x16] sm:$0x1] %v1406
    %1415 = vst [vmem:[#allocation12 + $0x26] sm:$0x1] %v1407
    %1416 = vst [vmem:[#allocation12 + $0x36] sm:$0x1] %v1408
    %1417 = vst [vmem:[#allocation12 + $0x46] sm:$0x1] %v1409
    %1418 = vst [vmem:[#allocation12 + $0x56] sm:$0x1] %v1410
    %1419 = vst [vmem:[#allocation12 + $0x66] sm:$0x1] %v1411
    %1420 = vst [vmem:[#allocation12 + $0x76] sm:$0x1] %v1412
    %v1421 = vld [vmem:[#allocation2 + $0x6] sm:$0x1]
    %v1422 = vld [vmem:[#allocation2 + $0x16] sm:$0x1]
    %v1423 = vld [vmem:[#allocation2 + $0x26] sm:$0x1]
    %v1424 = vld [vmem:[#allocation2 + $0x36] sm:$0x1]
    %v1425 = vld [vmem:[#allocation2 + $0x46] sm:$0x1]
    %v1426 = vld [vmem:[#allocation2 + $0x56] sm:$0x1]
    %v1427 = vld [vmem:[#allocation2 + $0x66] sm:$0x1]
    %v1428 = vld [vmem:[#allocation2 + $0x76] sm:$0x1]
    %v1429 = vld [vmem:[#allocation3 + $0x6] sm:$0x1]
    %v1430 = vld [vmem:[#allocation3 + $0x16] sm:$0x1]
    %v1431 = vld [vmem:[#allocation3 + $0x26] sm:$0x1]
    %v1432 = vld [vmem:[#allocation3 + $0x36] sm:$0x1]
    %v1433 = vld [vmem:[#allocation3 + $0x46] sm:$0x1]
    %v1434 = vld [vmem:[#allocation3 + $0x56] sm:$0x1]
    %v1435 = vld [vmem:[#allocation3 + $0x66] sm:$0x1]
    %v1436 = vld [vmem:[#allocation3 + $0x76] sm:$0x1]
    %v1437 = vmul.f32 %v1421, %v1405
    %v1438 = vmul.f32 %v1422, %v1406
    %v1439 = vmul.f32 %v1423, %v1407
    %v1440 = vmul.f32 %v1424, %v1408
    %v1441 = vmul.f32 %v1425, %v1409
    %v1442 = vmul.f32 %v1426, %v1410
    %v1443 = vmul.f32 %v1427, %v1411
    %v1444 = vmul.f32 %v1428, %v1412
    %v1445 = vadd.f32 %v1437, %v1429
    %v1446 = vadd.f32 %v1438, %v1430
    %v1447 = vadd.f32 %v1439, %v1431
    %v1448 = vadd.f32 %v1440, %v1432
    %v1449 = vadd.f32 %v1441, %v1433
    %v1450 = vadd.f32 %v1442, %v1434
    %v1451 = vadd.f32 %v1443, %v1435
    %v1452 = vadd.f32 %v1444, %v1436
    %1453 = vst [vmem:[#allocation12 + $0x7] sm:$0x1] %v1445
    %1454 = vst [vmem:[#allocation12 + $0x17] sm:$0x1] %v1446
    %1455 = vst [vmem:[#allocation12 + $0x27] sm:$0x1] %v1447
    %1456 = vst [vmem:[#allocation12 + $0x37] sm:$0x1] %v1448
    %1457 = vst [vmem:[#allocation12 + $0x47] sm:$0x1] %v1449
    %1458 = vst [vmem:[#allocation12 + $0x57] sm:$0x1] %v1450
    %1459 = vst [vmem:[#allocation12 + $0x67] sm:$0x1] %v1451
    %1460 = vst [vmem:[#allocation12 + $0x77] sm:$0x1] %v1452
    %v1461 = vld [vmem:[#allocation2 + $0x7] sm:$0x1]
    %v1462 = vld [vmem:[#allocation2 + $0x17] sm:$0x1]
    %v1463 = vld [vmem:[#allocation2 + $0x27] sm:$0x1]
    %v1464 = vld [vmem:[#allocation2 + $0x37] sm:$0x1]
    %v1465 = vld [vmem:[#allocation2 + $0x47] sm:$0x1]
    %v1466 = vld [vmem:[#allocation2 + $0x57] sm:$0x1]
    %v1467 = vld [vmem:[#allocation2 + $0x67] sm:$0x1]
    %v1468 = vld [vmem:[#allocation2 + $0x77] sm:$0x1]
    %v1469 = vld [vmem:[#allocation3 + $0x7] sm:$0x1]
    %v1470 = vld [vmem:[#allocation3 + $0x17] sm:$0x1]
    %v1471 = vld [vmem:[#allocation3 + $0x27] sm:$0x1]
    %v1472 = vld [vmem:[#allocation3 + $0x37] sm:$0x1]
    %v1473 = vld [vmem:[#allocation3 + $0x47] sm:$0x1]
    %v1474 = vld [vmem:[#allocation3 + $0x57] sm:$0x1]
    %v1475 = vld [vmem:[#allocation3 + $0x67] sm:$0x1]
    %v1476 = vld [vmem:[#allocation3 + $0x77] sm:$0x1]
    %v1477 = vmul.f32 %v1461, %v1445
    %v1478 = vmul.f32 %v1462, %v1446
    %v1479 = vmul.f32 %v1463, %v1447
    %v1480 = vmul.f32 %v1464, %v1448
    %v1481 = vmul.f32 %v1465, %v1449
    %v1482 = vmul.f32 %v1466, %v1450
    %v1483 = vmul.f32 %v1467, %v1451
    %v1484 = vmul.f32 %v1468, %v1452
    %v1485 = vadd.f32 %v1477, %v1469
    %v1486 = vadd.f32 %v1478, %v1470
    %v1487 = vadd.f32 %v1479, %v1471
    %v1488 = vadd.f32 %v1480, %v1472
    %v1489 = vadd.f32 %v1481, %v1473
    %v1490 = vadd.f32 %v1482, %v1474
    %v1491 = vadd.f32 %v1483, %v1475
    %v1492 = vadd.f32 %v1484, %v1476
    %1493 = vst [vmem:[#allocation12 + $0x8] sm:$0x1] %v1485
    %1494 = vst [vmem:[#allocation12 + $0x18] sm:$0x1] %v1486
    %1495 = vst [vmem:[#allocation12 + $0x28] sm:$0x1] %v1487
    %1496 = vst [vmem:[#allocation12 + $0x38] sm:$0x1] %v1488
    %1497 = vst [vmem:[#allocation12 + $0x48] sm:$0x1] %v1489
    %1498 = vst [vmem:[#allocation12 + $0x58] sm:$0x1] %v1490
    %1499 = vst [vmem:[#allocation12 + $0x68] sm:$0x1] %v1491
    %1500 = vst [vmem:[#allocation12 + $0x78] sm:$0x1] %v1492
    %v1501 = vld [vmem:[#allocation2 + $0x8] sm:$0x1]
    %v1502 = vld [vmem:[#allocation2 + $0x18] sm:$0x1]
    %v1503 = vld [vmem:[#allocation2 + $0x28] sm:$0x1]
    %v1504 = vld [vmem:[#allocation2 + $0x38] sm:$0x1]
    %v1505 = vld [vmem:[#allocation2 + $0x48] sm:$0x1]
    %v1506 = vld [vmem:[#allocation2 + $0x58] sm:$0x1]
    %v1507 = vld [vmem:[#allocation2 + $0x68] sm:$0x1]
    %v1508 = vld [vmem:[#allocation2 + $0x78] sm:$0x1]
    %v1509 = vld [vmem:[#allocation3 + $0x8] sm:$0x1]
    %v1510 = vld [vmem:[#allocation3 + $0x18] sm:$0x1]
    %v1511 = vld [vmem:[#allocation3 + $0x28] sm:$0x1]
    %v1512 = vld [vmem:[#allocation3 + $0x38] sm:$0x1]
    %v1513 = vld [vmem:[#allocation3 + $0x48] sm:$0x1]
    %v1514 = vld [vmem:[#allocation3 + $0x58] sm:$0x1]
    %v1515 = vld [vmem:[#allocation3 + $0x68] sm:$0x1]
    %v1516 = vld [vmem:[#allocation3 + $0x78] sm:$0x1]
    %v1517 = vmul.f32 %v1501, %v1485
    %v1518 = vmul.f32 %v1502, %v1486
    %v1519 = vmul.f32 %v1503, %v1487
    %v1520 = vmul.f32 %v1504, %v1488
    %v1521 = vmul.f32 %v1505, %v1489
    %v1522 = vmul.f32 %v1506, %v1490
    %v1523 = vmul.f32 %v1507, %v1491
    %v1524 = vmul.f32 %v1508, %v1492
    %v1525 = vadd.f32 %v1517, %v1509
    %v1526 = vadd.f32 %v1518, %v1510
    %v1527 = vadd.f32 %v1519, %v1511
    %v1528 = vadd.f32 %v1520, %v1512
    %v1529 = vadd.f32 %v1521, %v1513
    %v1530 = vadd.f32 %v1522, %v1514
    %v1531 = vadd.f32 %v1523, %v1515
    %v1532 = vadd.f32 %v1524, %v1516
    %1533 = vst [vmem:[#allocation12 + $0x9] sm:$0x1] %v1525
    %1534 = vst [vmem:[#allocation12 + $0x19] sm:$0x1] %v1526
    %1535 = vst [vmem:[#allocation12 + $0x29] sm:$0x1] %v1527
    %1536 = vst [vmem:[#allocation12 + $0x39] sm:$0x1] %v1528
    %1537 = vst [vmem:[#allocation12 + $0x49] sm:$0x1] %v1529
    %1538 = vst [vmem:[#allocation12 + $0x59] sm:$0x1] %v1530
    %1539 = vst [vmem:[#allocation12 + $0x69] sm:$0x1] %v1531
    %1540 = vst [vmem:[#allocation12 + $0x79] sm:$0x1] %v1532
    %v1541 = vld [vmem:[#allocation2 + $0x9] sm:$0x1]
    %v1542 = vld [vmem:[#allocation2 + $0x19] sm:$0x1]
    %v1543 = vld [vmem:[#allocation2 + $0x29] sm:$0x1]
    %v1544 = vld [vmem:[#allocation2 + $0x39] sm:$0x1]
    %v1545 = vld [vmem:[#allocation2 + $0x49] sm:$0x1]
    %v1546 = vld [vmem:[#allocation2 + $0x59] sm:$0x1]
    %v1547 = vld [vmem:[#allocation2 + $0x69] sm:$0x1]
    %v1548 = vld [vmem:[#allocation2 + $0x79] sm:$0x1]
    %v1549 = vld [vmem:[#allocation3 + $0x9] sm:$0x1]
    %v1550 = vld [vmem:[#allocation3 + $0x19] sm:$0x1]
    %v1551 = vld [vmem:[#allocation3 + $0x29] sm:$0x1]
    %v1552 = vld [vmem:[#allocation3 + $0x39] sm:$0x1]
    %v1553 = vld [vmem:[#allocation3 + $0x49] sm:$0x1]
    %v1554 = vld [vmem:[#allocation3 + $0x59] sm:$0x1]
    %v1555 = vld [vmem:[#allocation3 + $0x69] sm:$0x1]
    %v1556 = vld [vmem:[#allocation3 + $0x79] sm:$0x1]
    %v1557 = vmul.f32 %v1541, %v1525
    %v1558 = vmul.f32 %v1542, %v1526
    %v1559 = vmul.f32 %v1543, %v1527
    %v1560 = vmul.f32 %v1544, %v1528
    %v1561 = vmul.f32 %v1545, %v1529
    %v1562 = vmul.f32 %v1546, %v1530
    %v1563 = vmul.f32 %v1547, %v1531
    %v1564 = vmul.f32 %v1548, %v1532
    %v1565 = vadd.f32 %v1557, %v1549
    %v1566 = vadd.f32 %v1558, %v1550
    %v1567 = vadd.f32 %v1559, %v1551
    %v1568 = vadd.f32 %v1560, %v1552
    %v1569 = vadd.f32 %v1561, %v1553
    %v1570 = vadd.f32 %v1562, %v1554
    %v1571 = vadd.f32 %v1563, %v1555
    %v1572 = vadd.f32 %v1564, %v1556
    %1573 = vst [vmem:[#allocation12 + $0xa] sm:$0x1] %v1565
    %1574 = vst [vmem:[#allocation12 + $0x1a] sm:$0x1] %v1566
    %1575 = vst [vmem:[#allocation12 + $0x2a] sm:$0x1] %v1567
    %1576 = vst [vmem:[#allocation12 + $0x3a] sm:$0x1] %v1568
    %1577 = vst [vmem:[#allocation12 + $0x4a] sm:$0x1] %v1569
    %1578 = vst [vmem:[#allocation12 + $0x5a] sm:$0x1] %v1570
    %1579 = vst [vmem:[#allocation12 + $0x6a] sm:$0x1] %v1571
    %1580 = vst [vmem:[#allocation12 + $0x7a] sm:$0x1] %v1572
    %v1581 = vld [vmem:[#allocation2 + $0xa] sm:$0x1]
    %v1582 = vld [vmem:[#allocation2 + $0x1a] sm:$0x1]
    %v1583 = vld [vmem:[#allocation2 + $0x2a] sm:$0x1]
    %v1584 = vld [vmem:[#allocation2 + $0x3a] sm:$0x1]
    %v1585 = vld [vmem:[#allocation2 + $0x4a] sm:$0x1]
    %v1586 = vld [vmem:[#allocation2 + $0x5a] sm:$0x1]
    %v1587 = vld [vmem:[#allocation2 + $0x6a] sm:$0x1]
    %v1588 = vld [vmem:[#allocation2 + $0x7a] sm:$0x1]
    %v1589 = vld [vmem:[#allocation3 + $0xa] sm:$0x1]
    %v1590 = vld [vmem:[#allocation3 + $0x1a] sm:$0x1]
    %v1591 = vld [vmem:[#allocation3 + $0x2a] sm:$0x1]
    %v1592 = vld [vmem:[#allocation3 + $0x3a] sm:$0x1]
    %v1593 = vld [vmem:[#allocation3 + $0x4a] sm:$0x1]
    %v1594 = vld [vmem:[#allocation3 + $0x5a] sm:$0x1]
    %v1595 = vld [vmem:[#allocation3 + $0x6a] sm:$0x1]
    %v1596 = vld [vmem:[#allocation3 + $0x7a] sm:$0x1]
    %v1597 = vmul.f32 %v1581, %v1565
    %v1598 = vmul.f32 %v1582, %v1566
    %v1599 = vmul.f32 %v1583, %v1567
    %v1600 = vmul.f32 %v1584, %v1568
    %v1601 = vmul.f32 %v1585, %v1569
    %v1602 = vmul.f32 %v1586, %v1570
    %v1603 = vmul.f32 %v1587, %v1571
    %v1604 = vmul.f32 %v1588, %v1572
    %v1605 = vadd.f32 %v1597, %v1589
    %v1606 = vadd.f32 %v1598, %v1590
    %v1607 = vadd.f32 %v1599, %v1591
    %v1608 = vadd.f32 %v1600, %v1592
    %v1609 = vadd.f32 %v1601, %v1593
    %v1610 = vadd.f32 %v1602, %v1594
    %v1611 = vadd.f32 %v1603, %v1595
    %v1612 = vadd.f32 %v1604, %v1596
    %1613 = vst [vmem:[#allocation12 + $0xb] sm:$0x1] %v1605
    %1614 = vst [vmem:[#allocation12 + $0x1b] sm:$0x1] %v1606
    %1615 = vst [vmem:[#allocation12 + $0x2b] sm:$0x1] %v1607
    %1616 = vst [vmem:[#allocation12 + $0x3b] sm:$0x1] %v1608
    %1617 = vst [vmem:[#allocation12 + $0x4b] sm:$0x1] %v1609
    %1618 = vst [vmem:[#allocation12 + $0x5b] sm:$0x1] %v1610
    %1619 = vst [vmem:[#allocation12 + $0x6b] sm:$0x1] %v1611
    %1620 = vst [vmem:[#allocation12 + $0x7b] sm:$0x1] %v1612
    %v1621 = vld [vmem:[#allocation2 + $0xb] sm:$0x1]
    %v1622 = vld [vmem:[#allocation2 + $0x1b] sm:$0x1]
    %v1623 = vld [vmem:[#allocation2 + $0x2b] sm:$0x1]
    %v1624 = vld [vmem:[#allocation2 + $0x3b] sm:$0x1]
    %v1625 = vld [vmem:[#allocation2 + $0x4b] sm:$0x1]
    %v1626 = vld [vmem:[#allocation2 + $0x5b] sm:$0x1]
    %v1627 = vld [vmem:[#allocation2 + $0x6b] sm:$0x1]
    %v1628 = vld [vmem:[#allocation2 + $0x7b] sm:$0x1]
    %v1629 = vld [vmem:[#allocation3 + $0xb] sm:$0x1]
    %v1630 = vld [vmem:[#allocation3 + $0x1b] sm:$0x1]
    %v1631 = vld [vmem:[#allocation3 + $0x2b] sm:$0x1]
    %v1632 = vld [vmem:[#allocation3 + $0x3b] sm:$0x1]
    %v1633 = vld [vmem:[#allocation3 + $0x4b] sm:$0x1]
    %v1634 = vld [vmem:[#allocation3 + $0x5b] sm:$0x1]
    %v1635 = vld [vmem:[#allocation3 + $0x6b] sm:$0x1]
    %v1636 = vld [vmem:[#allocation3 + $0x7b] sm:$0x1]
    %v1637 = vmul.f32 %v1621, %v1605
    %v1638 = vmul.f32 %v1622, %v1606
    %v1639 = vmul.f32 %v1623, %v1607
    %v1640 = vmul.f32 %v1624, %v1608
    %v1641 = vmul.f32 %v1625, %v1609
    %v1642 = vmul.f32 %v1626, %v1610
    %v1643 = vmul.f32 %v1627, %v1611
    %v1644 = vmul.f32 %v1628, %v1612
    %v1645 = vadd.f32 %v1637, %v1629
    %v1646 = vadd.f32 %v1638, %v1630
    %v1647 = vadd.f32 %v1639, %v1631
    %v1648 = vadd.f32 %v1640, %v1632
    %v1649 = vadd.f32 %v1641, %v1633
    %v1650 = vadd.f32 %v1642, %v1634
    %v1651 = vadd.f32 %v1643, %v1635
    %v1652 = vadd.f32 %v1644, %v1636
    %1653 = vst [vmem:[#allocation12 + $0xc] sm:$0x1] %v1645
    %1654 = vst [vmem:[#allocation12 + $0x1c] sm:$0x1] %v1646
    %1655 = vst [vmem:[#allocation12 + $0x2c] sm:$0x1] %v1647
    %1656 = vst [vmem:[#allocation12 + $0x3c] sm:$0x1] %v1648
    %1657 = vst [vmem:[#allocation12 + $0x4c] sm:$0x1] %v1649
    %1658 = vst [vmem:[#allocation12 + $0x5c] sm:$0x1] %v1650
    %1659 = vst [vmem:[#allocation12 + $0x6c] sm:$0x1] %v1651
    %1660 = vst [vmem:[#allocation12 + $0x7c] sm:$0x1] %v1652
    %v1661 = vld [vmem:[#allocation2 + $0xc] sm:$0x1]
    %v1662 = vld [vmem:[#allocation2 + $0x1c] sm:$0x1]
    %v1663 = vld [vmem:[#allocation2 + $0x2c] sm:$0x1]
    %v1664 = vld [vmem:[#allocation2 + $0x3c] sm:$0x1]
    %v1665 = vld [vmem:[#allocation2 + $0x4c] sm:$0x1]
    %v1666 = vld [vmem:[#allocation2 + $0x5c] sm:$0x1]
    %v1667 = vld [vmem:[#allocation2 + $0x6c] sm:$0x1]
    %v1668 = vld [vmem:[#allocation2 + $0x7c] sm:$0x1]
    %v1669 = vld [vmem:[#allocation3 + $0xc] sm:$0x1]
    %v1670 = vld [vmem:[#allocation3 + $0x1c] sm:$0x1]
    %v1671 = vld [vmem:[#allocation3 + $0x2c] sm:$0x1]
    %v1672 = vld [vmem:[#allocation3 + $0x3c] sm:$0x1]
    %v1673 = vld [vmem:[#allocation3 + $0x4c] sm:$0x1]
    %v1674 = vld [vmem:[#allocation3 + $0x5c] sm:$0x1]
    %v1675 = vld [vmem:[#allocation3 + $0x6c] sm:$0x1]
    %v1676 = vld [vmem:[#allocation3 + $0x7c] sm:$0x1]
    %v1677 = vmul.f32 %v1661, %v1645
    %v1678 = vmul.f32 %v1662, %v1646
    %v1679 = vmul.f32 %v1663, %v1647
    %v1680 = vmul.f32 %v1664, %v1648
    %v1681 = vmul.f32 %v1665, %v1649
    %v1682 = vmul.f32 %v1666, %v1650
    %v1683 = vmul.f32 %v1667, %v1651
    %v1684 = vmul.f32 %v1668, %v1652
    %v1685 = vadd.f32 %v1677, %v1669
    %v1686 = vadd.f32 %v1678, %v1670
    %v1687 = vadd.f32 %v1679, %v1671
    %v1688 = vadd.f32 %v1680, %v1672
    %v1689 = vadd.f32 %v1681, %v1673
    %v1690 = vadd.f32 %v1682, %v1674
    %v1691 = vadd.f32 %v1683, %v1675
    %v1692 = vadd.f32 %v1684, %v1676
    %1693 = vst [vmem:[#allocation12 + $0xd] sm:$0x1] %v1685
    %1694 = vst [vmem:[#allocation12 + $0x1d] sm:$0x1] %v1686
    %1695 = vst [vmem:[#allocation12 + $0x2d] sm:$0x1] %v1687
    %1696 = vst [vmem:[#allocation12 + $0x3d] sm:$0x1] %v1688
    %1697 = vst [vmem:[#allocation12 + $0x4d] sm:$0x1] %v1689
    %1698 = vst [vmem:[#allocation12 + $0x5d] sm:$0x1] %v1690
    %1699 = vst [vmem:[#allocation12 + $0x6d] sm:$0x1] %v1691
    %1700 = vst [vmem:[#allocation12 + $0x7d] sm:$0x1] %v1692
    %v1701 = vld [vmem:[#allocation2 + $0xd] sm:$0x1]
    %v1702 = vld [vmem:[#allocation2 + $0x1d] sm:$0x1]
    %v1703 = vld [vmem:[#allocation2 + $0x2d] sm:$0x1]
    %v1704 = vld [vmem:[#allocation2 + $0x3d] sm:$0x1]
    %v1705 = vld [vmem:[#allocation2 + $0x4d] sm:$0x1]
    %v1706 = vld [vmem:[#allocation2 + $0x5d] sm:$0x1]
    %v1707 = vld [vmem:[#allocation2 + $0x6d] sm:$0x1]
    %v1708 = vld [vmem:[#allocation2 + $0x7d] sm:$0x1]
    %v1709 = vld [vmem:[#allocation3 + $0xd] sm:$0x1]
    %v1710 = vld [vmem:[#allocation3 + $0x1d] sm:$0x1]
    %v1711 = vld [vmem:[#allocation3 + $0x2d] sm:$0x1]
    %v1712 = vld [vmem:[#allocation3 + $0x3d] sm:$0x1]
    %v1713 = vld [vmem:[#allocation3 + $0x4d] sm:$0x1]
    %v1714 = vld [vmem:[#allocation3 + $0x5d] sm:$0x1]
    %v1715 = vld [vmem:[#allocation3 + $0x6d] sm:$0x1]
    %v1716 = vld [vmem:[#allocation3 + $0x7d] sm:$0x1]
    %v1717 = vmul.f32 %v1701, %v1685
    %v1718 = vmul.f32 %v1702, %v1686
    %v1719 = vmul.f32 %v1703, %v1687
    %v1720 = vmul.f32 %v1704, %v1688
    %v1721 = vmul.f32 %v1705, %v1689
    %v1722 = vmul.f32 %v1706, %v1690
    %v1723 = vmul.f32 %v1707, %v1691
    %v1724 = vmul.f32 %v1708, %v1692
    %v1725 = vadd.f32 %v1717, %v1709
    %v1726 = vadd.f32 %v1718, %v1710
    %v1727 = vadd.f32 %v1719, %v1711
    %v1728 = vadd.f32 %v1720, %v1712
    %v1729 = vadd.f32 %v1721, %v1713
    %v1730 = vadd.f32 %v1722, %v1714
    %v1731 = vadd.f32 %v1723, %v1715
    %v1732 = vadd.f32 %v1724, %v1716
    %1733 = vst [vmem:[#allocation12 + $0xe] sm:$0x1] %v1725
    %1734 = vst [vmem:[#allocation12 + $0x1e] sm:$0x1] %v1726
    %1735 = vst [vmem:[#allocation12 + $0x2e] sm:$0x1] %v1727
    %1736 = vst [vmem:[#allocation12 + $0x3e] sm:$0x1] %v1728
    %1737 = vst [vmem:[#allocation12 + $0x4e] sm:$0x1] %v1729
    %1738 = vst [vmem:[#allocation12 + $0x5e] sm:$0x1] %v1730
    %1739 = vst [vmem:[#allocation12 + $0x6e] sm:$0x1] %v1731
    %1740 = vst [vmem:[#allocation12 + $0x7e] sm:$0x1] %v1732
    %v1741 = vld [vmem:[#allocation2 + $0xe] sm:$0x1]
    %v1742 = vld [vmem:[#allocation2 + $0x1e] sm:$0x1]
    %v1743 = vld [vmem:[#allocation2 + $0x2e] sm:$0x1]
    %v1744 = vld [vmem:[#allocation2 + $0x3e] sm:$0x1]
    %v1745 = vld [vmem:[#allocation2 + $0x4e] sm:$0x1]
    %v1746 = vld [vmem:[#allocation2 + $0x5e] sm:$0x1]
    %v1747 = vld [vmem:[#allocation2 + $0x6e] sm:$0x1]
    %v1748 = vld [vmem:[#allocation2 + $0x7e] sm:$0x1]
    %v1749 = vld [vmem:[#allocation3 + $0xe] sm:$0x1]
    %v1750 = vld [vmem:[#allocation3 + $0x1e] sm:$0x1]
    %v1751 = vld [vmem:[#allocation3 + $0x2e] sm:$0x1]
    %v1752 = vld [vmem:[#allocation3 + $0x3e] sm:$0x1]
    %v1753 = vld [vmem:[#allocation3 + $0x4e] sm:$0x1]
    %v1754 = vld [vmem:[#allocation3 + $0x5e] sm:$0x1]
    %v1755 = vld [vmem:[#allocation3 + $0x6e] sm:$0x1]
    %v1756 = vld [vmem:[#allocation3 + $0x7e] sm:$0x1]
    %v1757 = vmul.f32 %v1741, %v1725
    %v1758 = vmul.f32 %v1742, %v1726
    %v1759 = vmul.f32 %v1743, %v1727
    %v1760 = vmul.f32 %v1744, %v1728
    %v1761 = vmul.f32 %v1745, %v1729
    %v1762 = vmul.f32 %v1746, %v1730
    %v1763 = vmul.f32 %v1747, %v1731
    %v1764 = vmul.f32 %v1748, %v1732
    %v1765 = vadd.f32 %v1757, %v1749
    %v1766 = vadd.f32 %v1758, %v1750
    %v1767 = vadd.f32 %v1759, %v1751
    %v1768 = vadd.f32 %v1760, %v1752
    %v1769 = vadd.f32 %v1761, %v1753
    %v1770 = vadd.f32 %v1762, %v1754
    %v1771 = vadd.f32 %v1763, %v1755
    %v1772 = vadd.f32 %v1764, %v1756
    %1773 = vst [vmem:[#allocation12 + $0xf] sm:$0x1] %v1765
    %1774 = vst [vmem:[#allocation12 + $0x1f] sm:$0x1] %v1766
    %1775 = vst [vmem:[#allocation12 + $0x2f] sm:$0x1] %v1767
    %1776 = vst [vmem:[#allocation12 + $0x3f] sm:$0x1] %v1768
    %1777 = vst [vmem:[#allocation12 + $0x4f] sm:$0x1] %v1769
    %1778 = vst [vmem:[#allocation12 + $0x5f] sm:$0x1] %v1770
    %1779 = vst [vmem:[#allocation12 + $0x6f] sm:$0x1] %v1771
    %1780 = vst [vmem:[#allocation12 + $0x7f] sm:$0x1] %v1772
    // Predicated region
    $region42: #{tpu_custom_call.1} parent=1 // pred_check
      _
    $region43: #{tpu_custom_call.1} parent=1 // pred_check_branch
      %1782 = sbr.rel (0) target = $region45
    $region44: #{tpu_custom_call.1} parent=1 // pred_region
      %s1784 = ssub.s32 2048, 2048
      %1785 = vsyncadd [#allocation6], %s1784
      %s1786 = sshll.u32 [#allocation12], 4
      %s1787 = int_to_ptr.vmem [resolvable:$true] %s1786
      %1792 = dma.vmem_to_hbm [thread:$0]  %s1787, 2048, %s6, [#allocation6], 128, 128, 8
    $region45: #{tpu_custom_call.1} parent=1 // pred_fallthru
      _
    // Predicated region
    $region46: #{tpu_custom_call.1} parent=1 // pred_check
      _
    $region47: #{tpu_custom_call.1} parent=1 // pred_check_branch
      %1794 = sbr.rel (0) target = $region49
    $region48: #{tpu_custom_call.1} parent=1 // pred_region
      %1795 = dma.done [#allocation6], 2048
    $region49: #{tpu_custom_call.1} parent=1 // pred_fallthru
      _
    %1796 = vsyncpa [#allocation5], 1
    %1797 = vsyncpa [#allocation8], 1
    %1798 = vsyncpa [#allocation11], 1
    %1799 = vsyncpa [#allocation6], 1

</llo_original>
